<compile_context>
chip_gen: v7x
topology: tpu7x:2x2x1
jax: 0.10.0
libtpu: 0.0.40
codegen_flags: <defaults>
</compile_context>

<pallas_src>
import functools
import math

import numpy as np
import jax
import jax.numpy as jnp
from jax.experimental import pallas as pl
from jax.experimental.pallas import tpu as pltpu

_EPS = 1e-5
_HIGH = jax.lax.Precision.HIGHEST
_G_CAP = 32          # max logical rows packed per lane-line
_LANES_CAP = 4096    # bound m/mt resident size (2 * lanes * G * 4B <= 1 MiB)


def _cdiv(a, b):
    return -(-a // b)


# --------------------------------------------------------------------------- #
# Kernels
# --------------------------------------------------------------------------- #
def _ln_rows_kernel(x_ref, w_ref, b_ref, o_ref):
    """Standard layout: block (tm, C), reduce over the lane axis.

    Fused sum / sum-of-squares: x is streamed from VMEM once for the stats and
    once for the output (2 reads + 1 store vs. 3 + 1 for the centered form).
    """
    x = x_ref[...].astype(jnp.float32)
    c = x.shape[-1]
    inv_c = 1.0 / c
    s1 = jnp.sum(x, axis=-1, keepdims=True)
    s2 = jnp.sum(x * x, axis=-1, keepdims=True)
    mu = s1 * inv_c
    var = jnp.maximum(s2 * inv_c - mu * mu, 0.0)      # unbiased=False; clamp cancellation
    inv = jax.lax.rsqrt(var + _EPS)                   # EUP
    w = w_ref[...].astype(jnp.float32)
    b = b_ref[...].astype(jnp.float32)
    o_ref[...] = ((x - mu) * inv * w + b).astype(o_ref.dtype)


def _ln_dense_kernel(x_ref, w_ref, b_ref, m_ref, mt_ref, o_ref, *, c):
    """Lane-dense layout for C % 128 != 0.

    x_ref: (tm, L) with L = G*C a multiple of 128; each lane-row holds G whole
    logical rows of length C back-to-back.  m_ref: (L, G) 0/1 segment-sum
    matrix, mt_ref: (G, L) segment-broadcast matrix.  w_ref/b_ref: (1, L)
    params tiled G times.  Two independent reduce matmuls, then two independent
    broadcast matmuls (2 dependent MXU stages total); all loads/stores are
    full-lane-width (no vst.msk partial stores).
    """
    x = x_ref[...].astype(jnp.float32)
    m = m_ref[...]
    mt = mt_ref[...]
    inv_c = 1.0 / c

    seg_sum = jnp.dot(x, m, precision=_HIGH,
                      preferred_element_type=jnp.float32)           # (tm, G)
    seg_sq = jnp.dot(x * x, m, precision=_HIGH,
                     preferred_element_type=jnp.float32)            # (tm, G)
    mu = seg_sum * inv_c
    var = jnp.maximum(seg_sq * inv_c - mu * mu, 0.0)
    inv = jax.lax.rsqrt(var + _EPS)                                 # (tm, G)

    inv_b = jnp.dot(inv, mt, precision=_HIGH,
                    preferred_element_type=jnp.float32)             # (tm, L)
    mui_b = jnp.dot(mu * inv, mt, precision=_HIGH,
                    preferred_element_type=jnp.float32)             # (tm, L)

    w = w_ref[...].astype(jnp.float32)
    b = b_ref[...].astype(jnp.float32)
    # (x - mu)/sigma * w + b  ==  (x*inv - mu*inv) * w + b
    o_ref[...] = ((x * inv_b - mui_b) * w + b).astype(o_ref.dtype)


# --------------------------------------------------------------------------- #
# Helpers
# --------------------------------------------------------------------------- #
@functools.lru_cache(maxsize=None)
def _segment_mats(c, g):
    """0/1 segment-sum (L, G) and segment-broadcast (G, L) matrices, cached
    per (C, G) so eager callers pay the host->device upload only once."""
    lanes = c * g
    seg = np.arange(lanes) // c
    m = (seg[:, None] == np.arange(g)[None, :]).astype(np.float32)
    return jnp.asarray(m), jnp.asarray(np.ascontiguousarray(m.T))


def _tpu_layout_params():
    """(num_tensorcores_per_device, target block bytes) for the local TPU."""
    kind = ""
    try:
        kind = jax.devices()[0].device_kind.lower()
    except Exception:
        pass
    # v4/v5p (megacore) and v7x expose 2 TensorCores behind one device; the
    # "parallel" grid axis shards across them.  v5e/v6e are single-TC.
    num_tc = 2 if any(t in kind for t in ("v4", "v5p", "v7")) else 1
    # ~4 MiB blocks on v4/v5p/v6e/v7x: double-buffered in+out = 16 MiB, inside
    # their 32 MiB default scoped VMEM (and v7x's 64 MiB physical VMEM).
    # v5e's default scoped VMEM is 16 MiB -> stay at ~2 MiB blocks so no
    # vmem_limit_bytes override is needed.
    if any(t in kind for t in ("v4", "v5p", "v6", "v7")):
        budget = 4 << 20
    else:
        budget = 2 << 20
    return num_tc, budget


def _pick_tm(rows, lanes, itemsize, target_bytes, num_tc):
    """Row tile: ~target_bytes per block, dtype-aware sublane multiple.

    On 2-TC parts the block count is rounded up to a multiple of num_tc with
    near-equal blocks (an uneven 2-with-long-tail split leaves one core idle);
    on 1-TC parts small inputs keep a single maximal block (no forced split).
    """
    sub = max(8, 32 // itemsize)            # 8 f32, 16 bf16, 32 int8
    groups = _cdiv(rows, sub)               # row count in sublane groups
    cap_groups = max(1, target_bytes // (lanes * itemsize * sub))
    nblk = _cdiv(groups, cap_groups)
    if num_tc > 1 and groups > 1:
        nblk = _cdiv(max(nblk, num_tc), num_tc) * num_tc
    if nblk == 1:
        return rows                          # full-dim block: no masked stores
    return _cdiv(groups, nblk) * sub


# --------------------------------------------------------------------------- #
# Wrapper
# --------------------------------------------------------------------------- #
def withbias_layernorm(x, weight, bias, *, target_block_bytes=None):
    """x: (..., C); weight, bias: (C,). Returns same shape/dtype as x.

    Matches torch: mean / var(unbiased=False) over the last dim, eps=1e-5,
    then (x - mu)/sqrt(var + eps) * weight + bias.
    """
    orig_shape = x.shape
    C = orig_shape[-1]
    x2d = x.reshape(-1, C)
    R = x2d.shape[0]
    itemsize = jnp.dtype(x.dtype).itemsize

    num_tc, auto_budget = _tpu_layout_params()
    if target_block_bytes is None:
        target_block_bytes = auto_budget

    # Lane-dense packed layout for any C that is not a multiple of 128
    # (full-lane-width stores are the biggest single lever for this kernel).
    use_dense = False
    G = 1
    if C % 128 != 0:
        lanes_dense = math.lcm(C, 128)
        G = lanes_dense // C
        use_dense = (G <= _G_CAP) and (lanes_dense <= _LANES_CAP)

    if use_dense:
        Rp = _cdiv(R, G) * G
        pad = Rp - R
        # <= G-1 dummy zero rows; the pad copy is tiny vs. losing the
        # lane-dense store path for odd H*W inputs.
        x_src = x2d if pad == 0 else jnp.pad(x2d, ((0, pad), (0, 0)))
        rows, lanes = Rp // G, G * C
        x_in = x_src.reshape(rows, lanes)        # contiguous row-major merge: free
        w_in = jnp.tile(weight.reshape(-1), G).reshape(1, lanes)
        b_in = jnp.tile(bias.reshape(-1), G).reshape(1, lanes)
        m, mt = _segment_mats(C, G)
    else:
        rows, lanes = R, C
        pad = 0
        x_in = x2d
        w_in = weight.reshape(1, C)
        b_in = bias.reshape(1, C)

    tm = _pick_tm(rows, lanes, itemsize, target_block_bytes, num_tc)
    grid = (_cdiv(rows, tm),)

    cost = pl.CostEstimate(
        flops=int(8 * rows * lanes * (1 + (G if use_dense else 0))),
        transcendentals=int(rows * (G if use_dense else 1)),
        bytes_accessed=int(2 * rows * lanes * itemsize),
    )
    cparams = pltpu.CompilerParams(dimension_semantics=("parallel",))
    out_shape = jax.ShapeDtypeStruct((rows, lanes), x.dtype)

    if use_dense:
        out = pl.pallas_call(
            functools.partial(_ln_dense_kernel, c=C),
            out_shape=out_shape,
            grid_spec=pltpu.PrefetchScalarGridSpec(
                num_scalar_prefetch=0,
                grid=grid,
                in_specs=[
                    pl.BlockSpec((tm, lanes), lambda i: (i, 0)),
                    pl.BlockSpec((1, lanes), lambda i: (0, 0)),
                    pl.BlockSpec((1, lanes), lambda i: (0, 0)),
                    pl.BlockSpec((lanes, G), lambda i: (0, 0)),
                    pl.BlockSpec((G, lanes), lambda i: (0, 0)),
                ],
                out_specs=pl.BlockSpec((tm, lanes), lambda i: (i, 0)),
            ),
            compiler_params=cparams,
            cost_estimate=cost,
        )(x_in, w_in, b_in, m, mt)
        out = out.reshape(-1, C)
        if pad:
            out = out[:R]
        return out.reshape(orig_shape)

    out = pl.pallas_call(
        _ln_rows_kernel,
        out_shape=out_shape,
        grid_spec=pltpu.PrefetchScalarGridSpec(
            num_scalar_prefetch=0,
            grid=grid,
            in_specs=[
                pl.BlockSpec((tm, lanes), lambda i: (i, 0)),
                pl.BlockSpec((1, lanes), lambda i: (0, 0)),
                pl.BlockSpec((1, lanes), lambda i: (0, 0)),
            ],
            out_specs=pl.BlockSpec((tm, lanes), lambda i: (i, 0)),
        ),
        compiler_params=cparams,
        cost_estimate=cost,
    )(x_in, w_in, b_in)
    return out.reshape(orig_shape)


# --------------------------------------------------------------------------- #
# Self-test
# --------------------------------------------------------------------------- #
if __name__ == "__main__":
    key = jax.random.PRNGKey(0)
    k1, k2, k3, k4, k5 = jax.random.split(key, 5)

    def ref_ln(x, w, b):
        xf = x.astype(jnp.float32)
        mu = jnp.mean(xf, axis=-1, keepdims=True)
        var = jnp.mean((xf - mu) ** 2, axis=-1, keepdims=True)   # unbiased=False
        return ((xf - mu) / jnp.sqrt(var + _EPS) * w + b).astype(x.dtype)

    # Case 1: narrow C=32 -> lane-dense path (G=4); R=98 exercises the
    # pad-to-multiple-of-G wrapper path and a ragged last grid block.
    B, S, C = 2, 49, 32
    x = jax.random.normal(k1, (B, S, C), dtype=jnp.float32)
    w = jnp.ones((C,), jnp.float32) + 0.1 * jax.random.normal(k2, (C,), jnp.float32)
    b = 0.1 * jax.random.normal(k3, (C,), jnp.float32)
    y = jax.block_until_ready(withbias_layernorm(x, w, b))
    assert y.shape == x.shape and y.dtype == x.dtype
    assert float(jnp.max(jnp.abs(y - ref_ln(x, w, b)))) < 2e-4, "dense-path (C=32) mismatch"

    # Case 2: C=256 (multiple of 128) -> standard rows path, ragged grid.
    B2, S2, C2 = 2, 25, 256
    x2 = jax.random.normal(k4, (B2, S2, C2), dtype=jnp.float32)
    w2 = jnp.ones((C2,), jnp.float32)
    b2 = jnp.zeros((C2,), jnp.float32)
    y2 = jax.block_until_ready(withbias_layernorm(x2, w2, b2))
    assert float(jnp.max(jnp.abs(y2 - ref_ln(x2, w2, b2)))) < 2e-4, "rows-path mismatch"

    # Case 3: C=192 (>=128, not a multiple of 128) -> extended lane-dense path (G=2).
    B3, S3, C3 = 4, 8, 192
    x3 = jax.random.normal(k5, (B3, S3, C3), dtype=jnp.float32)
    w3 = jnp.ones((C3,), jnp.float32) + 0.05 * jax.random.normal(k2, (C3,), jnp.float32)
    b3 = 0.05 * jax.random.normal(k3, (C3,), jnp.float32)
    y3 = jax.block_until_ready(withbias_layernorm(x3, w3, b3))
    assert float(jnp.max(jnp.abs(y3 - ref_ln(x3, w3, b3)))) < 2e-4, "dense-path (C=192) mismatch"

    print("KERNEL_OK")
</pallas_src>

<mosaic_0001>
module attributes {stable_mosaic.version = 11 : i64} {
  func.func @_ln_dense_kernel(%arg0: i32, %arg1: memref<25x128xf32, #tpu.memory_space<vmem>>, %arg2: memref<1x128xf32, #tpu.memory_space<vmem>>, %arg3: memref<1x128xf32, #tpu.memory_space<vmem>>, %arg4: memref<128x4xf32, #tpu.memory_space<vmem>>, %arg5: memref<4x128xf32, #tpu.memory_space<vmem>>, %arg6: memref<25x128xf32, #tpu.memory_space<vmem>>) attributes {dimension_semantics = [#tpu.dimension_semantics<parallel>], iteration_bounds = array<i64: 1>, scalar_prefetch = 0 : i64, scratch_operands = 0 : i64, tpu.core_type = #tpu.core_type<tc>, window_params = [{transform_indices = @transform_0, window_bounds = array<i64: 25, 128>}, {pipeline_mode = #tpu.pipeline_mode<synchronous>, transform_indices = @transform_1, window_bounds = array<i64: 1, 128>}, {pipeline_mode = #tpu.pipeline_mode<synchronous>, transform_indices = @transform_2, window_bounds = array<i64: 1, 128>}, {pipeline_mode = #tpu.pipeline_mode<synchronous>, transform_indices = @transform_3, window_bounds = array<i64: 128, 4>}, {pipeline_mode = #tpu.pipeline_mode<synchronous>, transform_indices = @transform_4, window_bounds = array<i64: 4, 128>}, {transform_indices = @transform_5, window_bounds = array<i64: 25, 128>}]} {
    %c0 = arith.constant 0 : index
    %c0_0 = arith.constant 0 : index
    %0 = vector.load %arg1[%c0, %c0_0] : memref<25x128xf32, #tpu.memory_space<vmem>>, vector<25x128xf32>
    %c0_1 = arith.constant 0 : index
    %c0_2 = arith.constant 0 : index
    %1 = vector.load %arg4[%c0_1, %c0_2] : memref<128x4xf32, #tpu.memory_space<vmem>>, vector<128x4xf32>
    %c0_3 = arith.constant 0 : index
    %c0_4 = arith.constant 0 : index
    %2 = vector.load %arg5[%c0_3, %c0_4] : memref<4x128xf32, #tpu.memory_space<vmem>>, vector<4x128xf32>
    %cst = arith.constant dense<0.000000e+00> : vector<25x4xf32>
    %3 = tpu.matmul %0, %1, %cst {dimension_numbers = #tpu.dot_dimension_numbers<[1], [0], [0], [1], [0, 0, 1, 1], [], []>, precision = #tpu.contract_precision<fp32>} : vector<25x128xf32>, vector<128x4xf32>, vector<25x4xf32> -> vector<25x4xf32>
    %4 = arith.mulf %0, %0 : vector<25x128xf32>
    %cst_5 = arith.constant dense<0.000000e+00> : vector<25x4xf32>
    %5 = tpu.matmul %4, %1, %cst_5 {dimension_numbers = #tpu.dot_dimension_numbers<[1], [0], [0], [1], [0, 0, 1, 1], [], []>, precision = #tpu.contract_precision<fp32>} : vector<25x128xf32>, vector<128x4xf32>, vector<25x4xf32> -> vector<25x4xf32>
    %cst_6 = arith.constant 3.125000e-02 : f32
    %6 = vector.broadcast %cst_6 : f32 to vector<25x4xf32>
    %7 = arith.mulf %3, %6 : vector<25x4xf32>
    %cst_7 = arith.constant 3.125000e-02 : f32
    %8 = vector.broadcast %cst_7 : f32 to vector<25x4xf32>
    %9 = arith.mulf %5, %8 : vector<25x4xf32>
    %10 = arith.mulf %7, %7 : vector<25x4xf32>
    %11 = arith.subf %9, %10 : vector<25x4xf32>
    %cst_8 = arith.constant 0.000000e+00 : f32
    %12 = vector.broadcast %cst_8 : f32 to vector<25x4xf32>
    %13 = arith.maximumf %11, %12 : vector<25x4xf32>
    %cst_9 = arith.constant 9.99999974E-6 : f32
    %14 = vector.broadcast %cst_9 : f32 to vector<25x4xf32>
    %15 = arith.addf %13, %14 : vector<25x4xf32>
    %16 = math.rsqrt %15 : vector<25x4xf32>
    %cst_10 = arith.constant dense<0.000000e+00> : vector<25x128xf32>
    %17 = tpu.matmul %16, %2, %cst_10 {dimension_numbers = #tpu.dot_dimension_numbers<[1], [0], [0], [1], [0, 0, 1, 1], [], []>, precision = #tpu.contract_precision<fp32>} : vector<25x4xf32>, vector<4x128xf32>, vector<25x128xf32> -> vector<25x128xf32>
    %18 = arith.mulf %7, %16 : vector<25x4xf32>
    %cst_11 = arith.constant dense<0.000000e+00> : vector<25x128xf32>
    %19 = tpu.matmul %18, %2, %cst_11 {dimension_numbers = #tpu.dot_dimension_numbers<[1], [0], [0], [1], [0, 0, 1, 1], [], []>, precision = #tpu.contract_precision<fp32>} : vector<25x4xf32>, vector<4x128xf32>, vector<25x128xf32> -> vector<25x128xf32>
    %c0_12 = arith.constant 0 : index
    %c0_13 = arith.constant 0 : index
    %20 = vector.load %arg2[%c0_12, %c0_13] : memref<1x128xf32, #tpu.memory_space<vmem>>, vector<1x128xf32>
    %c0_14 = arith.constant 0 : index
    %c0_15 = arith.constant 0 : index
    %21 = vector.load %arg3[%c0_14, %c0_15] : memref<1x128xf32, #tpu.memory_space<vmem>>, vector<1x128xf32>
    %22 = arith.mulf %0, %17 : vector<25x128xf32>
    %23 = arith.subf %22, %19 : vector<25x128xf32>
    %24 = vector.broadcast %20 : vector<1x128xf32> to vector<25x128xf32>
    %25 = arith.mulf %23, %24 : vector<25x128xf32>
    %26 = vector.broadcast %21 : vector<1x128xf32> to vector<25x128xf32>
    %27 = arith.addf %25, %26 : vector<25x128xf32>
    %c0_16 = arith.constant 0 : index
    %c0_17 = arith.constant 0 : index
    %28 = vector.load %arg6[%c0_16, %c0_17] : memref<25x128xf32, #tpu.memory_space<vmem>>, vector<25x128xf32>
    tpu.vector_store %arg6[%c0_16, %c0_17], %27 {strides = array<i32>} : memref<25x128xf32, #tpu.memory_space<vmem>>, vector<25x128xf32>,
    return
  }
  func.func @transform_0(%arg0: i32) -> (i32, i32) {
    %c0_i32 = arith.constant 0 : i32
    %c0_i32_0 = arith.constant 0 : i32
    return %arg0, %c0_i32 : i32, i32
  }
  func.func @transform_1(%arg0: i32) -> (i32, i32) {
    %c0_i32 = arith.constant 0 : i32
    %c0_i32_0 = arith.constant 0 : i32
    %c0_i32_1 = arith.constant 0 : i32
    return %c0_i32, %c0_i32_0 : i32, i32
  }
  func.func @transform_2(%arg0: i32) -> (i32, i32) {
    %c0_i32 = arith.constant 0 : i32
    %c0_i32_0 = arith.constant 0 : i32
    %c0_i32_1 = arith.constant 0 : i32
    return %c0_i32, %c0_i32_0 : i32, i32
  }
  func.func @transform_3(%arg0: i32) -> (i32, i32) {
    %c0_i32 = arith.constant 0 : i32
    %c0_i32_0 = arith.constant 0 : i32
    %c0_i32_1 = arith.constant 0 : i32
    return %c0_i32, %c0_i32_0 : i32, i32
  }
  func.func @transform_4(%arg0: i32) -> (i32, i32) {
    %c0_i32 = arith.constant 0 : i32
    %c0_i32_0 = arith.constant 0 : i32
    %c0_i32_1 = arith.constant 0 : i32
    return %c0_i32, %c0_i32_0 : i32, i32
  }
  func.func @transform_5(%arg0: i32) -> (i32, i32) {
    %c0_i32 = arith.constant 0 : i32
    %c0_i32_0 = arith.constant 0 : i32
    return %arg0, %c0_i32 : i32, i32
  }
}

</mosaic_0001>

<llo_original>
// kernel: tpu_custom_call.1
$region0: #{tpu_custom_call.1}
  #allocation0 [shape = 'u32[]', space=smem, size = 0x4, offset = 0x4, fixed_abs, tag = 'smem constant byte address 0x4 - core index']
  #allocation1 [shape = 'u32[144,128]{1,0:T(1,128)}', space=vmem, size = 0x12000, scoped, tag = 'internal scratch']
  %s0 = inlined_call_operand.vmem [shape: f32[25,128], index: 0, kind: input, shape index: {}]
  %s1 = inlined_call_operand.vmem [shape: f32[1,128], index: 1, kind: input, shape index: {}]
  %s2 = inlined_call_operand.vmem [shape: f32[1,128], index: 2, kind: input, shape index: {}]
  %s3 = inlined_call_operand.vmem [shape: f32[128,4], index: 3, kind: input, shape index: {}]
  %s4 = inlined_call_operand.vmem [shape: f32[4,128], index: 4, kind: input, shape index: {}]
  %s5 = inlined_call_operand.hbm [shape: f32[25,128], index: 5, kind: output, shape index: {}]
  %s6 = sld [smem:[#allocation0]]
  $region30: #{tpu_custom_call.1} parent=0
    _
  %s8 = ssub.s32 1, %s6
  %s9 = scalar_select 0, %s8, %s6
  $region1: #{tpu_custom_call.1} parent=0
    #allocation2 [shape = 'u8[16384]{0}', space=vmem, size = 0x4000, scoped, tag = 'output window, operand 0, single buffered']
    #allocation3 [shape = 's32[1]{0}', space=sflag, size = 0x4, scoped, tag = 'scoped memory for tpu_custom_call.1']
    %10 = vsyncpa [#allocation3], 0
    // Predicated region
    $region2: #{tpu_custom_call.1} parent=1 // pred_check
      _
    $region3: #{tpu_custom_call.1} parent=1 // pred_check_branch
      %12 = sbr.rel (0) target = $region5
    $region4: #{tpu_custom_call.1} parent=1 // pred_region
      _
    $region5: #{tpu_custom_call.1} parent=1 // pred_fallthru
      _
    // Predicated region
    $region6: #{tpu_custom_call.1} parent=1 // pred_check
      _
    $region7: #{tpu_custom_call.1} parent=1 // pred_check_branch
      %14 = sbr.rel (0) target = $region9
    $region8: #{tpu_custom_call.1} parent=1 // pred_region
      _
    $region9: #{tpu_custom_call.1} parent=1 // pred_fallthru
      _
    // Predicated region
    $region10: #{tpu_custom_call.1} parent=1 // pred_check
      _
    $region11: #{tpu_custom_call.1} parent=1 // pred_check_branch
      %16 = sbr.rel (0) target = $region13
    $region12: #{tpu_custom_call.1} parent=1 // pred_region
      _
    $region13: #{tpu_custom_call.1} parent=1 // pred_fallthru
      _
    // Predicated region
    $region14: #{tpu_custom_call.1} parent=1 // pred_check
      _
    $region15: #{tpu_custom_call.1} parent=1 // pred_check_branch
      %18 = sbr.rel (0) target = $region17
    $region16: #{tpu_custom_call.1} parent=1 // pred_region
      _
    $region17: #{tpu_custom_call.1} parent=1 // pred_fallthru
      _
    // Predicated region
    $region18: #{tpu_custom_call.1} parent=1 // pred_check
      _
    $region19: #{tpu_custom_call.1} parent=1 // pred_check_branch
      %20 = sbr.rel (0) target = $region21
    $region20: #{tpu_custom_call.1} parent=1 // pred_region
      _
    $region21: #{tpu_custom_call.1} parent=1 // pred_fallthru
      _
    %v21 = vld [vmem:[%s0] sm:$0xff]
    %v22 = vld [vmem:[%s0 + $0x8] sm:$0xff]
    %v23 = vld [vmem:[%s0 + $0x10] sm:$0xff]
    %v24 = vld [vmem:[%s0 + $0x18] sm:$0x1]
    %v25 = vld [vmem:[%s3] sm:$0xff]
    %v26 = vld [vmem:[%s3 + $0x8] sm:$0xff]
    %v27 = vld [vmem:[%s3 + $0x10] sm:$0xff]
    %v28 = vld [vmem:[%s3 + $0x18] sm:$0xff]
    %v29 = vld [vmem:[%s3 + $0x20] sm:$0xff]
    %v30 = vld [vmem:[%s3 + $0x28] sm:$0xff]
    %v31 = vld [vmem:[%s3 + $0x30] sm:$0xff]
    %v32 = vld [vmem:[%s3 + $0x38] sm:$0xff]
    %v33 = vld [vmem:[%s3 + $0x40] sm:$0xff]
    %v34 = vld [vmem:[%s3 + $0x48] sm:$0xff]
    %v35 = vld [vmem:[%s3 + $0x50] sm:$0xff]
    %v36 = vld [vmem:[%s3 + $0x58] sm:$0xff]
    %v37 = vld [vmem:[%s3 + $0x60] sm:$0xff]
    %v38 = vld [vmem:[%s3 + $0x68] sm:$0xff]
    %v39 = vld [vmem:[%s3 + $0x70] sm:$0xff]
    %v40 = vld [vmem:[%s3 + $0x78] sm:$0xff]
    %v41 = vld [vmem:[%s4] sm:$0xf]
    %42 = vmatprep.subr.mxu0 0.0
    %v43 = vand.u32 %v25, 4294901760
    %44 = vmatpush1.msra.mxu0 %v43
    %45 = vmatprep.subr.mxu0 0.0
    %v46 = vand.u32 %v26, 4294901760
    %47 = vmatpush1.msra.mxu0 %v46
    %48 = vmatprep.subr.mxu0 0.0
    %v49 = vand.u32 %v27, 4294901760
    %50 = vmatpush1.msra.mxu0 %v49
    %51 = vmatprep.subr.mxu0 0.0
    %v52 = vand.u32 %v28, 4294901760
    %53 = vmatpush1.msra.mxu0 %v52
    %54 = vmatprep.subr.mxu0 0.0
    %v55 = vand.u32 %v29, 4294901760
    %56 = vmatpush1.msra.mxu0 %v55
    %57 = vmatprep.subr.mxu0 0.0
    %v58 = vand.u32 %v30, 4294901760
    %59 = vmatpush1.msra.mxu0 %v58
    %60 = vmatprep.subr.mxu0 0.0
    %v61 = vand.u32 %v31, 4294901760
    %62 = vmatpush1.msra.mxu0 %v61
    %63 = vmatprep.subr.mxu0 0.0
    %v64 = vand.u32 %v32, 4294901760
    %65 = vmatpush1.msra.mxu0 %v64
    %66 = vmatprep.subr.mxu0 0.0
    %v67 = vand.u32 %v33, 4294901760
    %68 = vmatpush1.msra.mxu0 %v67
    %69 = vmatprep.subr.mxu0 0.0
    %v70 = vand.u32 %v34, 4294901760
    %71 = vmatpush1.msra.mxu0 %v70
    %72 = vmatprep.subr.mxu0 0.0
    %v73 = vand.u32 %v35, 4294901760
    %74 = vmatpush1.msra.mxu0 %v73
    %75 = vmatprep.subr.mxu0 0.0
    %v76 = vand.u32 %v36, 4294901760
    %77 = vmatpush1.msra.mxu0 %v76
    %78 = vmatprep.subr.mxu0 0.0
    %v79 = vand.u32 %v37, 4294901760
    %80 = vmatpush1.msra.mxu0 %v79
    %81 = vmatprep.subr.mxu0 0.0
    %v82 = vand.u32 %v38, 4294901760
    %83 = vmatpush1.msra.mxu0 %v82
    %84 = vmatprep.subr.mxu0 0.0
    %v85 = vand.u32 %v39, 4294901760
    %86 = vmatpush1.msra.mxu0 %v85
    %87 = vmatprep.subr.mxu0 0.0
    %v88 = vand.u32 %v40, 4294901760
    %89 = vmatpush1.msra.mxu0 %v88
    %90 = vmatprep.subr.mxu0 0.0
    %91 = vmatpush1.msra.mxu0 0.0
    %92 = vmatprep.subr.mxu0 0.0
    %93 = vmatpush1.msra.mxu0 0.0
    %94 = vmatprep.subr.mxu0 0.0
    %95 = vmatpush1.msra.mxu0 0.0
    %96 = vmatprep.subr.mxu0 0.0
    %97 = vmatpush1.msra.mxu0 0.0
    %98 = vmatprep.subr.mxu0 0.0
    %99 = vmatpush1.msra.mxu0 0.0
    %100 = vmatprep.subr.mxu0 0.0
    %101 = vmatpush1.msra.mxu0 0.0
    %102 = vmatprep.subr.mxu0 0.0
    %103 = vmatpush1.msra.mxu0 0.0
    %104 = vmatprep.subr.mxu0 0.0
    %105 = vmatpush1.msra.mxu0 0.0
    %106 = vmatprep.subr.mxu0 0.0
    %107 = vmatpush1.msra.mxu0 0.0
    %108 = vmatprep.subr.mxu0 0.0
    %109 = vmatpush1.msra.mxu0 0.0
    %110 = vmatprep.subr.mxu0 0.0
    %111 = vmatpush1.msra.mxu0 0.0
    %112 = vmatprep.subr.mxu0 0.0
    %113 = vmatpush1.msra.mxu0 0.0
    %114 = vmatprep.subr.mxu0 0.0
    %115 = vmatpush1.msra.mxu0 0.0
    %116 = vmatprep.subr.mxu0 0.0
    %117 = vmatpush1.msra.mxu0 0.0
    %118 = vmatprep.subr.mxu0 0.0
    %119 = vmatpush1.msra.mxu0 0.0
    %120 = vmatprep.subr.mxu0 0.0
    %121 = vmatpush1.msra.mxu0 0.0
    %122 = vmatprep.mubr.f32.mxu0 0.0
    %v123 = vand.u32 %v21, 4294901760
    %v124 = vsub.f32 %v21, %v123
    %v125 = vand.u32 %v124, 4294901760
    %v126 = vsub.f32 %v124, %v125
    %v127 = vand.u32 %v126, 4294901760
    %128 = vmatmul.mubr.f32.gmra.mrb[0].mxu0 %v127
    %v129 = vpop.f32.mrb[0].mxu0
    %v130 = vadd.f32 0.0, %v129
    %v131 = vpop.f32.mrb[0].mxu0
    %132 = vmatprep.mubr.f32.mxu0 0.0
    %v133 = vand.u32 %v22, 4294901760
    %v134 = vsub.f32 %v22, %v133
    %v135 = vand.u32 %v134, 4294901760
    %v136 = vsub.f32 %v134, %v135
    %v137 = vand.u32 %v136, 4294901760
    %138 = vmatmul.mubr.f32.gmra.mrb[0].mxu0 %v137
    %v139 = vpop.f32.mrb[0].mxu0
    %v140 = vadd.f32 0.0, %v139
    %v141 = vpop.f32.mrb[0].mxu0
    %142 = vmatprep.mubr.f32.mxu0 0.0
    %v143 = vand.u32 %v23, 4294901760
    %v144 = vsub.f32 %v23, %v143
    %v145 = vand.u32 %v144, 4294901760
    %v146 = vsub.f32 %v144, %v145
    %v147 = vand.u32 %v146, 4294901760
    %148 = vmatmul.mubr.f32.gmra.mrb[0].mxu0 %v147
    %v149 = vpop.f32.mrb[0].mxu0
    %v150 = vadd.f32 0.0, %v149
    %v151 = vpop.f32.mrb[0].mxu0
    %152 = vmatprep.mubr.f32.mxu0 0.0
    %v153 = vand.u32 %v24, 4294901760
    %v154 = vsub.f32 %v24, %v153
    %v155 = vand.u32 %v154, 4294901760
    %v156 = vsub.f32 %v154, %v155
    %v157 = vand.u32 %v156, 4294901760
    %158 = vmatmul.mubr.f32.gmra.mrb[0].mxu0 %v157
    %v159 = vpop.f32.mrb[0].mxu0
    %v160 = vadd.f32 0.0, %v159
    %v161 = vpop.f32.mrb[0].mxu0
    %162 = vdwg.mxu0
    %163 = vmatprep.subr.mxu0 0.0
    %v164 = vand.u32 %v25, 4294901760
    %v165 = vsub.f32 %v25, %v164
    %v166 = vand.u32 %v165, 4294901760
    %v167 = vsub.f32 %v165, %v166
    %v168 = vand.u32 %v167, 4294901760
    %169 = vmatpush1.msra.mxu0 %v168
    %170 = vmatprep.subr.mxu0 0.0
    %v171 = vand.u32 %v26, 4294901760
    %v172 = vsub.f32 %v26, %v171
    %v173 = vand.u32 %v172, 4294901760
    %v174 = vsub.f32 %v172, %v173
    %v175 = vand.u32 %v174, 4294901760
    %176 = vmatpush1.msra.mxu0 %v175
    %177 = vmatprep.subr.mxu0 0.0
    %v178 = vand.u32 %v27, 4294901760
    %v179 = vsub.f32 %v27, %v178
    %v180 = vand.u32 %v179, 4294901760
    %v181 = vsub.f32 %v179, %v180
    %v182 = vand.u32 %v181, 4294901760
    %183 = vmatpush1.msra.mxu0 %v182
    %184 = vmatprep.subr.mxu0 0.0
    %v185 = vand.u32 %v28, 4294901760
    %v186 = vsub.f32 %v28, %v185
    %v187 = vand.u32 %v186, 4294901760
    %v188 = vsub.f32 %v186, %v187
    %v189 = vand.u32 %v188, 4294901760
    %190 = vmatpush1.msra.mxu0 %v189
    %191 = vmatprep.subr.mxu0 0.0
    %v192 = vand.u32 %v29, 4294901760
    %v193 = vsub.f32 %v29, %v192
    %v194 = vand.u32 %v193, 4294901760
    %v195 = vsub.f32 %v193, %v194
    %v196 = vand.u32 %v195, 4294901760
    %197 = vmatpush1.msra.mxu0 %v196
    %198 = vmatprep.subr.mxu0 0.0
    %v199 = vand.u32 %v30, 4294901760
    %v200 = vsub.f32 %v30, %v199
    %v201 = vand.u32 %v200, 4294901760
    %v202 = vsub.f32 %v200, %v201
    %v203 = vand.u32 %v202, 4294901760
    %204 = vmatpush1.msra.mxu0 %v203
    %205 = vmatprep.subr.mxu0 0.0
    %v206 = vand.u32 %v31, 4294901760
    %v207 = vsub.f32 %v31, %v206
    %v208 = vand.u32 %v207, 4294901760
    %v209 = vsub.f32 %v207, %v208
    %v210 = vand.u32 %v209, 4294901760
    %211 = vmatpush1.msra.mxu0 %v210
    %212 = vmatprep.subr.mxu0 0.0
    %v213 = vand.u32 %v32, 4294901760
    %v214 = vsub.f32 %v32, %v213
    %v215 = vand.u32 %v214, 4294901760
    %v216 = vsub.f32 %v214, %v215
    %v217 = vand.u32 %v216, 4294901760
    %218 = vmatpush1.msra.mxu0 %v217
    %219 = vmatprep.subr.mxu0 0.0
    %v220 = vand.u32 %v33, 4294901760
    %v221 = vsub.f32 %v33, %v220
    %v222 = vand.u32 %v221, 4294901760
    %v223 = vsub.f32 %v221, %v222
    %v224 = vand.u32 %v223, 4294901760
    %225 = vmatpush1.msra.mxu0 %v224
    %226 = vmatprep.subr.mxu0 0.0
    %v227 = vand.u32 %v34, 4294901760
    %v228 = vsub.f32 %v34, %v227
    %v229 = vand.u32 %v228, 4294901760
    %v230 = vsub.f32 %v228, %v229
    %v231 = vand.u32 %v230, 4294901760
    %232 = vmatpush1.msra.mxu0 %v231
    %233 = vmatprep.subr.mxu0 0.0
    %v234 = vand.u32 %v35, 4294901760
    %v235 = vsub.f32 %v35, %v234
    %v236 = vand.u32 %v235, 4294901760
    %v237 = vsub.f32 %v235, %v236
    %v238 = vand.u32 %v237, 4294901760
    %239 = vmatpush1.msra.mxu0 %v238
    %240 = vmatprep.subr.mxu0 0.0
    %v241 = vand.u32 %v36, 4294901760
    %v242 = vsub.f32 %v36, %v241
    %v243 = vand.u32 %v242, 4294901760
    %v244 = vsub.f32 %v242, %v243
    %v245 = vand.u32 %v244, 4294901760
    %246 = vmatpush1.msra.mxu0 %v245
    %247 = vmatprep.subr.mxu0 0.0
    %v248 = vand.u32 %v37, 4294901760
    %v249 = vsub.f32 %v37, %v248
    %v250 = vand.u32 %v249, 4294901760
    %v251 = vsub.f32 %v249, %v250
    %v252 = vand.u32 %v251, 4294901760
    %253 = vmatpush1.msra.mxu0 %v252
    %254 = vmatprep.subr.mxu0 0.0
    %v255 = vand.u32 %v38, 4294901760
    %v256 = vsub.f32 %v38, %v255
    %v257 = vand.u32 %v256, 4294901760
    %v258 = vsub.f32 %v256, %v257
    %v259 = vand.u32 %v258, 4294901760
    %260 = vmatpush1.msra.mxu0 %v259
    %261 = vmatprep.subr.mxu0 0.0
    %v262 = vand.u32 %v39, 4294901760
    %v263 = vsub.f32 %v39, %v262
    %v264 = vand.u32 %v263, 4294901760
    %v265 = vsub.f32 %v263, %v264
    %v266 = vand.u32 %v265, 4294901760
    %267 = vmatpush1.msra.mxu0 %v266
    %268 = vmatprep.subr.mxu0 0.0
    %v269 = vand.u32 %v40, 4294901760
    %v270 = vsub.f32 %v40, %v269
    %v271 = vand.u32 %v270, 4294901760
    %v272 = vsub.f32 %v270, %v271
    %v273 = vand.u32 %v272, 4294901760
    %274 = vmatpush1.msra.mxu0 %v273
    %275 = vmatprep.subr.mxu0 0.0
    %276 = vmatpush1.msra.mxu0 0.0
    %277 = vmatprep.subr.mxu0 0.0
    %278 = vmatpush1.msra.mxu0 0.0
    %279 = vmatprep.subr.mxu0 0.0
    %280 = vmatpush1.msra.mxu0 0.0
    %281 = vmatprep.subr.mxu0 0.0
    %282 = vmatpush1.msra.mxu0 0.0
    %283 = vmatprep.subr.mxu0 0.0
    %284 = vmatpush1.msra.mxu0 0.0
    %285 = vmatprep.subr.mxu0 0.0
    %286 = vmatpush1.msra.mxu0 0.0
    %287 = vmatprep.subr.mxu0 0.0
    %288 = vmatpush1.msra.mxu0 0.0
    %289 = vmatprep.subr.mxu0 0.0
    %290 = vmatpush1.msra.mxu0 0.0
    %291 = vmatprep.subr.mxu0 0.0
    %292 = vmatpush1.msra.mxu0 0.0
    %293 = vmatprep.subr.mxu0 0.0
    %294 = vmatpush1.msra.mxu0 0.0
    %295 = vmatprep.subr.mxu0 0.0
    %296 = vmatpush1.msra.mxu0 0.0
    %297 = vmatprep.subr.mxu0 0.0
    %298 = vmatpush1.msra.mxu0 0.0
    %299 = vmatprep.subr.mxu0 0.0
    %300 = vmatpush1.msra.mxu0 0.0
    %301 = vmatprep.subr.mxu0 0.0
    %302 = vmatpush1.msra.mxu0 0.0
    %303 = vmatprep.subr.mxu0 0.0
    %304 = vmatpush1.msra.mxu0 0.0
    %305 = vmatprep.subr.mxu0 0.0
    %306 = vmatpush1.msra.mxu0 0.0
    %307 = vmatprep.mubr.f32.mxu0 0.0
    %v308 = vand.u32 %v21, 4294901760
    %309 = vmatmul.mubr.f32.gmra.mrb[0].mxu0 %v308
    %v310 = vpop.f32.mrb[0].mxu0
    %v311 = vadd.f32 %v130, %v310
    %v312 = vpop.f32.mrb[0].mxu0
    %313 = vmatprep.mubr.f32.mxu0 0.0
    %v314 = vand.u32 %v22, 4294901760
    %315 = vmatmul.mubr.f32.gmra.mrb[0].mxu0 %v314
    %v316 = vpop.f32.mrb[0].mxu0
    %v317 = vadd.f32 %v140, %v316
    %v318 = vpop.f32.mrb[0].mxu0
    %319 = vmatprep.mubr.f32.mxu0 0.0
    %v320 = vand.u32 %v23, 4294901760
    %321 = vmatmul.mubr.f32.gmra.mrb[0].mxu0 %v320
    %v322 = vpop.f32.mrb[0].mxu0
    %v323 = vadd.f32 %v150, %v322
    %v324 = vpop.f32.mrb[0].mxu0
    %325 = vmatprep.mubr.f32.mxu0 0.0
    %v326 = vand.u32 %v24, 4294901760
    %327 = vmatmul.mubr.f32.gmra.mrb[0].mxu0 %v326
    %v328 = vpop.f32.mrb[0].mxu0
    %v329 = vadd.f32 %v160, %v328
    %v330 = vpop.f32.mrb[0].mxu0
    %331 = vdwg.mxu0
    %332 = vmatprep.subr.mxu0 0.0
    %v333 = vand.u32 %v25, 4294901760
    %v334 = vsub.f32 %v25, %v333
    %335 = vmatpush1.msra.mxu0 %v334
    %336 = vmatprep.subr.mxu0 0.0
    %v337 = vand.u32 %v26, 4294901760
    %v338 = vsub.f32 %v26, %v337
    %339 = vmatpush1.msra.mxu0 %v338
    %340 = vmatprep.subr.mxu0 0.0
    %v341 = vand.u32 %v27, 4294901760
    %v342 = vsub.f32 %v27, %v341
    %343 = vmatpush1.msra.mxu0 %v342
    %344 = vmatprep.subr.mxu0 0.0
    %v345 = vand.u32 %v28, 4294901760
    %v346 = vsub.f32 %v28, %v345
    %347 = vmatpush1.msra.mxu0 %v346
    %348 = vmatprep.subr.mxu0 0.0
    %v349 = vand.u32 %v29, 4294901760
    %v350 = vsub.f32 %v29, %v349
    %351 = vmatpush1.msra.mxu0 %v350
    %352 = vmatprep.subr.mxu0 0.0
    %v353 = vand.u32 %v30, 4294901760
    %v354 = vsub.f32 %v30, %v353
    %355 = vmatpush1.msra.mxu0 %v354
    %356 = vmatprep.subr.mxu0 0.0
    %v357 = vand.u32 %v31, 4294901760
    %v358 = vsub.f32 %v31, %v357
    %359 = vmatpush1.msra.mxu0 %v358
    %360 = vmatprep.subr.mxu0 0.0
    %v361 = vand.u32 %v32, 4294901760
    %v362 = vsub.f32 %v32, %v361
    %363 = vmatpush1.msra.mxu0 %v362
    %364 = vmatprep.subr.mxu0 0.0
    %v365 = vand.u32 %v33, 4294901760
    %v366 = vsub.f32 %v33, %v365
    %367 = vmatpush1.msra.mxu0 %v366
    %368 = vmatprep.subr.mxu0 0.0
    %v369 = vand.u32 %v34, 4294901760
    %v370 = vsub.f32 %v34, %v369
    %371 = vmatpush1.msra.mxu0 %v370
    %372 = vmatprep.subr.mxu0 0.0
    %v373 = vand.u32 %v35, 4294901760
    %v374 = vsub.f32 %v35, %v373
    %375 = vmatpush1.msra.mxu0 %v374
    %376 = vmatprep.subr.mxu0 0.0
    %v377 = vand.u32 %v36, 4294901760
    %v378 = vsub.f32 %v36, %v377
    %379 = vmatpush1.msra.mxu0 %v378
    %380 = vmatprep.subr.mxu0 0.0
    %v381 = vand.u32 %v37, 4294901760
    %v382 = vsub.f32 %v37, %v381
    %383 = vmatpush1.msra.mxu0 %v382
    %384 = vmatprep.subr.mxu0 0.0
    %v385 = vand.u32 %v38, 4294901760
    %v386 = vsub.f32 %v38, %v385
    %387 = vmatpush1.msra.mxu0 %v386
    %388 = vmatprep.subr.mxu0 0.0
    %v389 = vand.u32 %v39, 4294901760
    %v390 = vsub.f32 %v39, %v389
    %391 = vmatpush1.msra.mxu0 %v390
    %392 = vmatprep.subr.mxu0 0.0
    %v393 = vand.u32 %v40, 4294901760
    %v394 = vsub.f32 %v40, %v393
    %395 = vmatpush1.msra.mxu0 %v394
    %396 = vmatprep.subr.mxu0 0.0
    %397 = vmatpush1.msra.mxu0 0.0
    %398 = vmatprep.subr.mxu0 0.0
    %399 = vmatpush1.msra.mxu0 0.0
    %400 = vmatprep.subr.mxu0 0.0
    %401 = vmatpush1.msra.mxu0 0.0
    %402 = vmatprep.subr.mxu0 0.0
    %403 = vmatpush1.msra.mxu0 0.0
    %404 = vmatprep.subr.mxu0 0.0
    %405 = vmatpush1.msra.mxu0 0.0
    %406 = vmatprep.subr.mxu0 0.0
    %407 = vmatpush1.msra.mxu0 0.0
    %408 = vmatprep.subr.mxu0 0.0
    %409 = vmatpush1.msra.mxu0 0.0
    %410 = vmatprep.subr.mxu0 0.0
    %411 = vmatpush1.msra.mxu0 0.0
    %412 = vmatprep.subr.mxu0 0.0
    %413 = vmatpush1.msra.mxu0 0.0
    %414 = vmatprep.subr.mxu0 0.0
    %415 = vmatpush1.msra.mxu0 0.0
    %416 = vmatprep.subr.mxu0 0.0
    %417 = vmatpush1.msra.mxu0 0.0
    %418 = vmatprep.subr.mxu0 0.0
    %419 = vmatpush1.msra.mxu0 0.0
    %420 = vmatprep.subr.mxu0 0.0
    %421 = vmatpush1.msra.mxu0 0.0
    %422 = vmatprep.subr.mxu0 0.0
    %423 = vmatpush1.msra.mxu0 0.0
    %424 = vmatprep.subr.mxu0 0.0
    %425 = vmatpush1.msra.mxu0 0.0
    %426 = vmatprep.subr.mxu0 0.0
    %427 = vmatpush1.msra.mxu0 0.0
    %428 = vmatprep.mubr.f32.mxu0 0.0
    %v429 = vand.u32 %v21, 4294901760
    %v430 = vsub.f32 %v21, %v429
    %431 = vmatmul.mubr.f32.gmra.mrb[0].mxu0 %v430
    %v432 = vpop.f32.mrb[0].mxu0
    %v433 = vadd.f32 %v311, %v432
    %v434 = vpop.f32.mrb[0].mxu0
    %435 = vmatprep.mubr.f32.mxu0 0.0
    %v436 = vand.u32 %v22, 4294901760
    %v437 = vsub.f32 %v22, %v436
    %438 = vmatmul.mubr.f32.gmra.mrb[0].mxu0 %v437
    %v439 = vpop.f32.mrb[0].mxu0
    %v440 = vadd.f32 %v317, %v439
    %v441 = vpop.f32.mrb[0].mxu0
    %442 = vmatprep.mubr.f32.mxu0 0.0
    %v443 = vand.u32 %v23, 4294901760
    %v444 = vsub.f32 %v23, %v443
    %445 = vmatmul.mubr.f32.gmra.mrb[0].mxu0 %v444
    %v446 = vpop.f32.mrb[0].mxu0
    %v447 = vadd.f32 %v323, %v446
    %v448 = vpop.f32.mrb[0].mxu0
    %449 = vmatprep.mubr.f32.mxu0 0.0
    %v450 = vand.u32 %v24, 4294901760
    %v451 = vsub.f32 %v24, %v450
    %452 = vmatmul.mubr.f32.gmra.mrb[0].mxu0 %v451
    %v453 = vpop.f32.mrb[0].mxu0
    %v454 = vadd.f32 %v329, %v453
    %v455 = vpop.f32.mrb[0].mxu0
    %456 = vdwg.mxu0
    %457 = vmatprep.subr.mxu0 0.0
    %v458 = vand.u32 %v25, 4294901760
    %459 = vmatpush1.msra.mxu0 %v458
    %460 = vmatprep.subr.mxu0 0.0
    %v461 = vand.u32 %v26, 4294901760
    %462 = vmatpush1.msra.mxu0 %v461
    %463 = vmatprep.subr.mxu0 0.0
    %v464 = vand.u32 %v27, 4294901760
    %465 = vmatpush1.msra.mxu0 %v464
    %466 = vmatprep.subr.mxu0 0.0
    %v467 = vand.u32 %v28, 4294901760
    %468 = vmatpush1.msra.mxu0 %v467
    %469 = vmatprep.subr.mxu0 0.0
    %v470 = vand.u32 %v29, 4294901760
    %471 = vmatpush1.msra.mxu0 %v470
    %472 = vmatprep.subr.mxu0 0.0
    %v473 = vand.u32 %v30, 4294901760
    %474 = vmatpush1.msra.mxu0 %v473
    %475 = vmatprep.subr.mxu0 0.0
    %v476 = vand.u32 %v31, 4294901760
    %477 = vmatpush1.msra.mxu0 %v476
    %478 = vmatprep.subr.mxu0 0.0
    %v479 = vand.u32 %v32, 4294901760
    %480 = vmatpush1.msra.mxu0 %v479
    %481 = vmatprep.subr.mxu0 0.0
    %v482 = vand.u32 %v33, 4294901760
    %483 = vmatpush1.msra.mxu0 %v482
    %484 = vmatprep.subr.mxu0 0.0
    %v485 = vand.u32 %v34, 4294901760
    %486 = vmatpush1.msra.mxu0 %v485
    %487 = vmatprep.subr.mxu0 0.0
    %v488 = vand.u32 %v35, 4294901760
    %489 = vmatpush1.msra.mxu0 %v488
    %490 = vmatprep.subr.mxu0 0.0
    %v491 = vand.u32 %v36, 4294901760
    %492 = vmatpush1.msra.mxu0 %v491
    %493 = vmatprep.subr.mxu0 0.0
    %v494 = vand.u32 %v37, 4294901760
    %495 = vmatpush1.msra.mxu0 %v494
    %496 = vmatprep.subr.mxu0 0.0
    %v497 = vand.u32 %v38, 4294901760
    %498 = vmatpush1.msra.mxu0 %v497
    %499 = vmatprep.subr.mxu0 0.0
    %v500 = vand.u32 %v39, 4294901760
    %501 = vmatpush1.msra.mxu0 %v500
    %502 = vmatprep.subr.mxu0 0.0
    %v503 = vand.u32 %v40, 4294901760
    %504 = vmatpush1.msra.mxu0 %v503
    %505 = vmatprep.subr.mxu0 0.0
    %506 = vmatpush1.msra.mxu0 0.0
    %507 = vmatprep.subr.mxu0 0.0
    %508 = vmatpush1.msra.mxu0 0.0
    %509 = vmatprep.subr.mxu0 0.0
    %510 = vmatpush1.msra.mxu0 0.0
    %511 = vmatprep.subr.mxu0 0.0
    %512 = vmatpush1.msra.mxu0 0.0
    %513 = vmatprep.subr.mxu0 0.0
    %514 = vmatpush1.msra.mxu0 0.0
    %515 = vmatprep.subr.mxu0 0.0
    %516 = vmatpush1.msra.mxu0 0.0
    %517 = vmatprep.subr.mxu0 0.0
    %518 = vmatpush1.msra.mxu0 0.0
    %519 = vmatprep.subr.mxu0 0.0
    %520 = vmatpush1.msra.mxu0 0.0
    %521 = vmatprep.subr.mxu0 0.0
    %522 = vmatpush1.msra.mxu0 0.0
    %523 = vmatprep.subr.mxu0 0.0
    %524 = vmatpush1.msra.mxu0 0.0
    %525 = vmatprep.subr.mxu0 0.0
    %526 = vmatpush1.msra.mxu0 0.0
    %527 = vmatprep.subr.mxu0 0.0
    %528 = vmatpush1.msra.mxu0 0.0
    %529 = vmatprep.subr.mxu0 0.0
    %530 = vmatpush1.msra.mxu0 0.0
    %531 = vmatprep.subr.mxu0 0.0
    %532 = vmatpush1.msra.mxu0 0.0
    %533 = vmatprep.subr.mxu0 0.0
    %534 = vmatpush1.msra.mxu0 0.0
    %535 = vmatprep.subr.mxu0 0.0
    %536 = vmatpush1.msra.mxu0 0.0
    %537 = vmatprep.mubr.f32.mxu0 0.0
    %v538 = vand.u32 %v21, 4294901760
    %v539 = vsub.f32 %v21, %v538
    %v540 = vand.u32 %v539, 4294901760
    %541 = vmatmul.mubr.f32.gmra.mrb[0].mxu0 %v540
    %v542 = vpop.f32.mrb[0].mxu0
    %v543 = vadd.f32 %v433, %v542
    %v544 = vpop.f32.mrb[0].mxu0
    %545 = vmatprep.mubr.f32.mxu0 0.0
    %v546 = vand.u32 %v22, 4294901760
    %v547 = vsub.f32 %v22, %v546
    %v548 = vand.u32 %v547, 4294901760
    %549 = vmatmul.mubr.f32.gmra.mrb[0].mxu0 %v548
    %v550 = vpop.f32.mrb[0].mxu0
    %v551 = vadd.f32 %v440, %v550
    %v552 = vpop.f32.mrb[0].mxu0
    %553 = vmatprep.mubr.f32.mxu0 0.0
    %v554 = vand.u32 %v23, 4294901760
    %v555 = vsub.f32 %v23, %v554
    %v556 = vand.u32 %v555, 4294901760
    %557 = vmatmul.mubr.f32.gmra.mrb[0].mxu0 %v556
    %v558 = vpop.f32.mrb[0].mxu0
    %v559 = vadd.f32 %v447, %v558
    %v560 = vpop.f32.mrb[0].mxu0
    %561 = vmatprep.mubr.f32.mxu0 0.0
    %v562 = vand.u32 %v24, 4294901760
    %v563 = vsub.f32 %v24, %v562
    %v564 = vand.u32 %v563, 4294901760
    %565 = vmatmul.mubr.f32.gmra.mrb[0].mxu0 %v564
    %v566 = vpop.f32.mrb[0].mxu0
    %v567 = vadd.f32 %v454, %v566
    %v568 = vpop.f32.mrb[0].mxu0
    %569 = vdwg.mxu0
    %570 = vmatprep.subr.mxu0 0.0
    %v571 = vand.u32 %v25, 4294901760
    %v572 = vsub.f32 %v25, %v571
    %v573 = vand.u32 %v572, 4294901760
    %574 = vmatpush1.msra.mxu0 %v573
    %575 = vmatprep.subr.mxu0 0.0
    %v576 = vand.u32 %v26, 4294901760
    %v577 = vsub.f32 %v26, %v576
    %v578 = vand.u32 %v577, 4294901760
    %579 = vmatpush1.msra.mxu0 %v578
    %580 = vmatprep.subr.mxu0 0.0
    %v581 = vand.u32 %v27, 4294901760
    %v582 = vsub.f32 %v27, %v581
    %v583 = vand.u32 %v582, 4294901760
    %584 = vmatpush1.msra.mxu0 %v583
    %585 = vmatprep.subr.mxu0 0.0
    %v586 = vand.u32 %v28, 4294901760
    %v587 = vsub.f32 %v28, %v586
    %v588 = vand.u32 %v587, 4294901760
    %589 = vmatpush1.msra.mxu0 %v588
    %590 = vmatprep.subr.mxu0 0.0
    %v591 = vand.u32 %v29, 4294901760
    %v592 = vsub.f32 %v29, %v591
    %v593 = vand.u32 %v592, 4294901760
    %594 = vmatpush1.msra.mxu0 %v593
    %595 = vmatprep.subr.mxu0 0.0
    %v596 = vand.u32 %v30, 4294901760
    %v597 = vsub.f32 %v30, %v596
    %v598 = vand.u32 %v597, 4294901760
    %599 = vmatpush1.msra.mxu0 %v598
    %600 = vmatprep.subr.mxu0 0.0
    %v601 = vand.u32 %v31, 4294901760
    %v602 = vsub.f32 %v31, %v601
    %v603 = vand.u32 %v602, 4294901760
    %604 = vmatpush1.msra.mxu0 %v603
    %605 = vmatprep.subr.mxu0 0.0
    %v606 = vand.u32 %v32, 4294901760
    %v607 = vsub.f32 %v32, %v606
    %v608 = vand.u32 %v607, 4294901760
    %609 = vmatpush1.msra.mxu0 %v608
    %610 = vmatprep.subr.mxu0 0.0
    %v611 = vand.u32 %v33, 4294901760
    %v612 = vsub.f32 %v33, %v611
    %v613 = vand.u32 %v612, 4294901760
    %614 = vmatpush1.msra.mxu0 %v613
    %615 = vmatprep.subr.mxu0 0.0
    %v616 = vand.u32 %v34, 4294901760
    %v617 = vsub.f32 %v34, %v616
    %v618 = vand.u32 %v617, 4294901760
    %619 = vmatpush1.msra.mxu0 %v618
    %620 = vmatprep.subr.mxu0 0.0
    %v621 = vand.u32 %v35, 4294901760
    %v622 = vsub.f32 %v35, %v621
    %v623 = vand.u32 %v622, 4294901760
    %624 = vmatpush1.msra.mxu0 %v623
    %625 = vmatprep.subr.mxu0 0.0
    %v626 = vand.u32 %v36, 4294901760
    %v627 = vsub.f32 %v36, %v626
    %v628 = vand.u32 %v627, 4294901760
    %629 = vmatpush1.msra.mxu0 %v628
    %630 = vmatprep.subr.mxu0 0.0
    %v631 = vand.u32 %v37, 4294901760
    %v632 = vsub.f32 %v37, %v631
    %v633 = vand.u32 %v632, 4294901760
    %634 = vmatpush1.msra.mxu0 %v633
    %635 = vmatprep.subr.mxu0 0.0
    %v636 = vand.u32 %v38, 4294901760
    %v637 = vsub.f32 %v38, %v636
    %v638 = vand.u32 %v637, 4294901760
    %639 = vmatpush1.msra.mxu0 %v638
    %640 = vmatprep.subr.mxu0 0.0
    %v641 = vand.u32 %v39, 4294901760
    %v642 = vsub.f32 %v39, %v641
    %v643 = vand.u32 %v642, 4294901760
    %644 = vmatpush1.msra.mxu0 %v643
    %645 = vmatprep.subr.mxu0 0.0
    %v646 = vand.u32 %v40, 4294901760
    %v647 = vsub.f32 %v40, %v646
    %v648 = vand.u32 %v647, 4294901760
    %649 = vmatpush1.msra.mxu0 %v648
    %650 = vmatprep.subr.mxu0 0.0
    %651 = vmatpush1.msra.mxu0 0.0
    %652 = vmatprep.subr.mxu0 0.0
    %653 = vmatpush1.msra.mxu0 0.0
    %654 = vmatprep.subr.mxu0 0.0
    %655 = vmatpush1.msra.mxu0 0.0
    %656 = vmatprep.subr.mxu0 0.0
    %657 = vmatpush1.msra.mxu0 0.0
    %658 = vmatprep.subr.mxu0 0.0
    %659 = vmatpush1.msra.mxu0 0.0
    %660 = vmatprep.subr.mxu0 0.0
    %661 = vmatpush1.msra.mxu0 0.0
    %662 = vmatprep.subr.mxu0 0.0
    %663 = vmatpush1.msra.mxu0 0.0
    %664 = vmatprep.subr.mxu0 0.0
    %665 = vmatpush1.msra.mxu0 0.0
    %666 = vmatprep.subr.mxu0 0.0
    %667 = vmatpush1.msra.mxu0 0.0
    %668 = vmatprep.subr.mxu0 0.0
    %669 = vmatpush1.msra.mxu0 0.0
    %670 = vmatprep.subr.mxu0 0.0
    %671 = vmatpush1.msra.mxu0 0.0
    %672 = vmatprep.subr.mxu0 0.0
    %673 = vmatpush1.msra.mxu0 0.0
    %674 = vmatprep.subr.mxu0 0.0
    %675 = vmatpush1.msra.mxu0 0.0
    %676 = vmatprep.subr.mxu0 0.0
    %677 = vmatpush1.msra.mxu0 0.0
    %678 = vmatprep.subr.mxu0 0.0
    %679 = vmatpush1.msra.mxu0 0.0
    %680 = vmatprep.subr.mxu0 0.0
    %681 = vmatpush1.msra.mxu0 0.0
    %682 = vmatprep.mubr.f32.mxu0 0.0
    %v683 = vand.u32 %v21, 4294901760
    %684 = vmatmul.mubr.f32.gmra.mrb[0].mxu0 %v683
    %v685 = vpop.f32.mrb[0].mxu0
    %v686 = vadd.f32 %v543, %v685
    %v687 = vpop.f32.mrb[0].mxu0
    %688 = vmatprep.mubr.f32.mxu0 0.0
    %v689 = vand.u32 %v22, 4294901760
    %690 = vmatmul.mubr.f32.gmra.mrb[0].mxu0 %v689
    %v691 = vpop.f32.mrb[0].mxu0
    %v692 = vadd.f32 %v551, %v691
    %v693 = vpop.f32.mrb[0].mxu0
    %694 = vmatprep.mubr.f32.mxu0 0.0
    %v695 = vand.u32 %v23, 4294901760
    %696 = vmatmul.mubr.f32.gmra.mrb[0].mxu0 %v695
    %v697 = vpop.f32.mrb[0].mxu0
    %v698 = vadd.f32 %v559, %v697
    %v699 = vpop.f32.mrb[0].mxu0
    %700 = vmatprep.mubr.f32.mxu0 0.0
    %v701 = vand.u32 %v24, 4294901760
    %702 = vmatmul.mubr.f32.gmra.mrb[0].mxu0 %v701
    %v703 = vpop.f32.mrb[0].mxu0
    %v704 = vadd.f32 %v567, %v703
    %v705 = vpop.f32.mrb[0].mxu0
    %706 = vdwg.mxu0
    %707 = vmatprep.subr.mxu0 0.0
    %v708 = vand.u32 %v25, 4294901760
    %709 = vmatpush1.msra.mxu0 %v708
    %710 = vmatprep.subr.mxu0 0.0
    %v711 = vand.u32 %v26, 4294901760
    %712 = vmatpush1.msra.mxu0 %v711
    %713 = vmatprep.subr.mxu0 0.0
    %v714 = vand.u32 %v27, 4294901760
    %715 = vmatpush1.msra.mxu0 %v714
    %716 = vmatprep.subr.mxu0 0.0
    %v717 = vand.u32 %v28, 4294901760
    %718 = vmatpush1.msra.mxu0 %v717
    %719 = vmatprep.subr.mxu0 0.0
    %v720 = vand.u32 %v29, 4294901760
    %721 = vmatpush1.msra.mxu0 %v720
    %722 = vmatprep.subr.mxu0 0.0
    %v723 = vand.u32 %v30, 4294901760
    %724 = vmatpush1.msra.mxu0 %v723
    %725 = vmatprep.subr.mxu0 0.0
    %v726 = vand.u32 %v31, 4294901760
    %727 = vmatpush1.msra.mxu0 %v726
    %728 = vmatprep.subr.mxu0 0.0
    %v729 = vand.u32 %v32, 4294901760
    %730 = vmatpush1.msra.mxu0 %v729
    %731 = vmatprep.subr.mxu0 0.0
    %v732 = vand.u32 %v33, 4294901760
    %733 = vmatpush1.msra.mxu0 %v732
    %734 = vmatprep.subr.mxu0 0.0
    %v735 = vand.u32 %v34, 4294901760
    %736 = vmatpush1.msra.mxu0 %v735
    %737 = vmatprep.subr.mxu0 0.0
    %v738 = vand.u32 %v35, 4294901760
    %739 = vmatpush1.msra.mxu0 %v738
    %740 = vmatprep.subr.mxu0 0.0
    %v741 = vand.u32 %v36, 4294901760
    %742 = vmatpush1.msra.mxu0 %v741
    %743 = vmatprep.subr.mxu0 0.0
    %v744 = vand.u32 %v37, 4294901760
    %745 = vmatpush1.msra.mxu0 %v744
    %746 = vmatprep.subr.mxu0 0.0
    %v747 = vand.u32 %v38, 4294901760
    %748 = vmatpush1.msra.mxu0 %v747
    %749 = vmatprep.subr.mxu0 0.0
    %v750 = vand.u32 %v39, 4294901760
    %751 = vmatpush1.msra.mxu0 %v750
    %752 = vmatprep.subr.mxu0 0.0
    %v753 = vand.u32 %v40, 4294901760
    %754 = vmatpush1.msra.mxu0 %v753
    %755 = vmatprep.subr.mxu0 0.0
    %756 = vmatpush1.msra.mxu0 0.0
    %757 = vmatprep.subr.mxu0 0.0
    %758 = vmatpush1.msra.mxu0 0.0
    %759 = vmatprep.subr.mxu0 0.0
    %760 = vmatpush1.msra.mxu0 0.0
    %761 = vmatprep.subr.mxu0 0.0
    %762 = vmatpush1.msra.mxu0 0.0
    %763 = vmatprep.subr.mxu0 0.0
    %764 = vmatpush1.msra.mxu0 0.0
    %765 = vmatprep.subr.mxu0 0.0
    %766 = vmatpush1.msra.mxu0 0.0
    %767 = vmatprep.subr.mxu0 0.0
    %768 = vmatpush1.msra.mxu0 0.0
    %769 = vmatprep.subr.mxu0 0.0
    %770 = vmatpush1.msra.mxu0 0.0
    %771 = vmatprep.subr.mxu0 0.0
    %772 = vmatpush1.msra.mxu0 0.0
    %773 = vmatprep.subr.mxu0 0.0
    %774 = vmatpush1.msra.mxu0 0.0
    %775 = vmatprep.subr.mxu0 0.0
    %776 = vmatpush1.msra.mxu0 0.0
    %777 = vmatprep.subr.mxu0 0.0
    %778 = vmatpush1.msra.mxu0 0.0
    %779 = vmatprep.subr.mxu0 0.0
    %780 = vmatpush1.msra.mxu0 0.0
    %781 = vmatprep.subr.mxu0 0.0
    %782 = vmatpush1.msra.mxu0 0.0
    %783 = vmatprep.subr.mxu0 0.0
    %784 = vmatpush1.msra.mxu0 0.0
    %785 = vmatprep.subr.mxu0 0.0
    %786 = vmatpush1.msra.mxu0 0.0
    %787 = vmatprep.mubr.f32.mxu0 0.0
    %v788 = vand.u32 %v21, 4294901760
    %789 = vmatmul.mubr.f32.gmra.mrb[0].mxu0 %v788
    %v790 = vpop.f32.mrb[0].mxu0
    %v791 = vadd.f32 %v686, %v790
    %v792 = vpop.f32.mrb[0].mxu0
    %793 = vmatprep.mubr.f32.mxu0 0.0
    %v794 = vand.u32 %v22, 4294901760
    %795 = vmatmul.mubr.f32.gmra.mrb[0].mxu0 %v794
    %v796 = vpop.f32.mrb[0].mxu0
    %v797 = vadd.f32 %v692, %v796
    %v798 = vpop.f32.mrb[0].mxu0
    %799 = vmatprep.mubr.f32.mxu0 0.0
    %v800 = vand.u32 %v23, 4294901760
    %801 = vmatmul.mubr.f32.gmra.mrb[0].mxu0 %v800
    %v802 = vpop.f32.mrb[0].mxu0
    %v803 = vadd.f32 %v698, %v802
    %v804 = vpop.f32.mrb[0].mxu0
    %805 = vmatprep.mubr.f32.mxu0 0.0
    %v806 = vand.u32 %v24, 4294901760
    %807 = vmatmul.mubr.f32.gmra.mrb[0].mxu0 %v806
    %v808 = vpop.f32.mrb[0].mxu0
    %v809 = vadd.f32 %v704, %v808
    %v810 = vpop.f32.mrb[0].mxu0
    %811 = vdwg.mxu0
    %v812 = vmul.f32 %v21, %v21
    %v813 = vmul.f32 %v22, %v22
    %v814 = vmul.f32 %v23, %v23
    %v815 = vmul.f32 %v24, %v24
    %816 = vmatprep.subr.mxu0 0.0
    %v817 = vand.u32 %v25, 4294901760
    %818 = vmatpush1.msra.mxu0 %v817
    %819 = vmatprep.subr.mxu0 0.0
    %v820 = vand.u32 %v26, 4294901760
    %821 = vmatpush1.msra.mxu0 %v820
    %822 = vmatprep.subr.mxu0 0.0
    %v823 = vand.u32 %v27, 4294901760
    %824 = vmatpush1.msra.mxu0 %v823
    %825 = vmatprep.subr.mxu0 0.0
    %v826 = vand.u32 %v28, 4294901760
    %827 = vmatpush1.msra.mxu0 %v826
    %828 = vmatprep.subr.mxu0 0.0
    %v829 = vand.u32 %v29, 4294901760
    %830 = vmatpush1.msra.mxu0 %v829
    %831 = vmatprep.subr.mxu0 0.0
    %v832 = vand.u32 %v30, 4294901760
    %833 = vmatpush1.msra.mxu0 %v832
    %834 = vmatprep.subr.mxu0 0.0
    %v835 = vand.u32 %v31, 4294901760
    %836 = vmatpush1.msra.mxu0 %v835
    %837 = vmatprep.subr.mxu0 0.0
    %v838 = vand.u32 %v32, 4294901760
    %839 = vmatpush1.msra.mxu0 %v838
    %840 = vmatprep.subr.mxu0 0.0
    %v841 = vand.u32 %v33, 4294901760
    %842 = vmatpush1.msra.mxu0 %v841
    %843 = vmatprep.subr.mxu0 0.0
    %v844 = vand.u32 %v34, 4294901760
    %845 = vmatpush1.msra.mxu0 %v844
    %846 = vmatprep.subr.mxu0 0.0
    %v847 = vand.u32 %v35, 4294901760
    %848 = vmatpush1.msra.mxu0 %v847
    %849 = vmatprep.subr.mxu0 0.0
    %v850 = vand.u32 %v36, 4294901760
    %851 = vmatpush1.msra.mxu0 %v850
    %852 = vmatprep.subr.mxu0 0.0
    %v853 = vand.u32 %v37, 4294901760
    %854 = vmatpush1.msra.mxu0 %v853
    %855 = vmatprep.subr.mxu0 0.0
    %v856 = vand.u32 %v38, 4294901760
    %857 = vmatpush1.msra.mxu0 %v856
    %858 = vmatprep.subr.mxu0 0.0
    %v859 = vand.u32 %v39, 4294901760
    %860 = vmatpush1.msra.mxu0 %v859
    %861 = vmatprep.subr.mxu0 0.0
    %v862 = vand.u32 %v40, 4294901760
    %863 = vmatpush1.msra.mxu0 %v862
    %864 = vmatprep.subr.mxu0 0.0
    %865 = vmatpush1.msra.mxu0 0.0
    %866 = vmatprep.subr.mxu0 0.0
    %867 = vmatpush1.msra.mxu0 0.0
    %868 = vmatprep.subr.mxu0 0.0
    %869 = vmatpush1.msra.mxu0 0.0
    %870 = vmatprep.subr.mxu0 0.0
    %871 = vmatpush1.msra.mxu0 0.0
    %872 = vmatprep.subr.mxu0 0.0
    %873 = vmatpush1.msra.mxu0 0.0
    %874 = vmatprep.subr.mxu0 0.0
    %875 = vmatpush1.msra.mxu0 0.0
    %876 = vmatprep.subr.mxu0 0.0
    %877 = vmatpush1.msra.mxu0 0.0
    %878 = vmatprep.subr.mxu0 0.0
    %879 = vmatpush1.msra.mxu0 0.0
    %880 = vmatprep.subr.mxu0 0.0
    %881 = vmatpush1.msra.mxu0 0.0
    %882 = vmatprep.subr.mxu0 0.0
    %883 = vmatpush1.msra.mxu0 0.0
    %884 = vmatprep.subr.mxu0 0.0
    %885 = vmatpush1.msra.mxu0 0.0
    %886 = vmatprep.subr.mxu0 0.0
    %887 = vmatpush1.msra.mxu0 0.0
    %888 = vmatprep.subr.mxu0 0.0
    %889 = vmatpush1.msra.mxu0 0.0
    %890 = vmatprep.subr.mxu0 0.0
    %891 = vmatpush1.msra.mxu0 0.0
    %892 = vmatprep.subr.mxu0 0.0
    %893 = vmatpush1.msra.mxu0 0.0
    %894 = vmatprep.subr.mxu0 0.0
    %895 = vmatpush1.msra.mxu0 0.0
    %896 = vmatprep.mubr.f32.mxu0 0.0
    %v897 = vand.u32 %v812, 4294901760
    %v898 = vsub.f32 %v812, %v897
    %v899 = vand.u32 %v898, 4294901760
    %v900 = vsub.f32 %v898, %v899
    %v901 = vand.u32 %v900, 4294901760
    %902 = vmatmul.mubr.f32.gmra.mrb[0].mxu0 %v901
    %v903 = vpop.f32.mrb[0].mxu0
    %v904 = vadd.f32 0.0, %v903
    %v905 = vpop.f32.mrb[0].mxu0
    %906 = vmatprep.mubr.f32.mxu0 0.0
    %v907 = vand.u32 %v813, 4294901760
    %v908 = vsub.f32 %v813, %v907
    %v909 = vand.u32 %v908, 4294901760
    %v910 = vsub.f32 %v908, %v909
    %v911 = vand.u32 %v910, 4294901760
    %912 = vmatmul.mubr.f32.gmra.mrb[0].mxu0 %v911
    %v913 = vpop.f32.mrb[0].mxu0
    %v914 = vadd.f32 0.0, %v913
    %v915 = vpop.f32.mrb[0].mxu0
    %916 = vmatprep.mubr.f32.mxu0 0.0
    %v917 = vand.u32 %v814, 4294901760
    %v918 = vsub.f32 %v814, %v917
    %v919 = vand.u32 %v918, 4294901760
    %v920 = vsub.f32 %v918, %v919
    %v921 = vand.u32 %v920, 4294901760
    %922 = vmatmul.mubr.f32.gmra.mrb[0].mxu0 %v921
    %v923 = vpop.f32.mrb[0].mxu0
    %v924 = vadd.f32 0.0, %v923
    %v925 = vpop.f32.mrb[0].mxu0
    %926 = vmatprep.mubr.f32.mxu0 0.0
    %v927 = vand.u32 %v815, 4294901760
    %v928 = vsub.f32 %v815, %v927
    %v929 = vand.u32 %v928, 4294901760
    %v930 = vsub.f32 %v928, %v929
    %v931 = vand.u32 %v930, 4294901760
    %932 = vmatmul.mubr.f32.gmra.mrb[0].mxu0 %v931
    %v933 = vpop.f32.mrb[0].mxu0
    %v934 = vadd.f32 0.0, %v933
    %v935 = vpop.f32.mrb[0].mxu0
    %936 = vdwg.mxu0
    %937 = vmatprep.subr.mxu0 0.0
    %v938 = vand.u32 %v25, 4294901760
    %v939 = vsub.f32 %v25, %v938
    %v940 = vand.u32 %v939, 4294901760
    %v941 = vsub.f32 %v939, %v940
    %v942 = vand.u32 %v941, 4294901760
    %943 = vmatpush1.msra.mxu0 %v942
    %944 = vmatprep.subr.mxu0 0.0
    %v945 = vand.u32 %v26, 4294901760
    %v946 = vsub.f32 %v26, %v945
    %v947 = vand.u32 %v946, 4294901760
    %v948 = vsub.f32 %v946, %v947
    %v949 = vand.u32 %v948, 4294901760
    %950 = vmatpush1.msra.mxu0 %v949
    %951 = vmatprep.subr.mxu0 0.0
    %v952 = vand.u32 %v27, 4294901760
    %v953 = vsub.f32 %v27, %v952
    %v954 = vand.u32 %v953, 4294901760
    %v955 = vsub.f32 %v953, %v954
    %v956 = vand.u32 %v955, 4294901760
    %957 = vmatpush1.msra.mxu0 %v956
    %958 = vmatprep.subr.mxu0 0.0
    %v959 = vand.u32 %v28, 4294901760
    %v960 = vsub.f32 %v28, %v959
    %v961 = vand.u32 %v960, 4294901760
    %v962 = vsub.f32 %v960, %v961
    %v963 = vand.u32 %v962, 4294901760
    %964 = vmatpush1.msra.mxu0 %v963
    %965 = vmatprep.subr.mxu0 0.0
    %v966 = vand.u32 %v29, 4294901760
    %v967 = vsub.f32 %v29, %v966
    %v968 = vand.u32 %v967, 4294901760
    %v969 = vsub.f32 %v967, %v968
    %v970 = vand.u32 %v969, 4294901760
    %971 = vmatpush1.msra.mxu0 %v970
    %972 = vmatprep.subr.mxu0 0.0
    %v973 = vand.u32 %v30, 4294901760
    %v974 = vsub.f32 %v30, %v973
    %v975 = vand.u32 %v974, 4294901760
    %v976 = vsub.f32 %v974, %v975
    %v977 = vand.u32 %v976, 4294901760
    %978 = vmatpush1.msra.mxu0 %v977
    %979 = vmatprep.subr.mxu0 0.0
    %v980 = vand.u32 %v31, 4294901760
    %v981 = vsub.f32 %v31, %v980
    %v982 = vand.u32 %v981, 4294901760
    %v983 = vsub.f32 %v981, %v982
    %v984 = vand.u32 %v983, 4294901760
    %985 = vmatpush1.msra.mxu0 %v984
    %986 = vmatprep.subr.mxu0 0.0
    %v987 = vand.u32 %v32, 4294901760
    %v988 = vsub.f32 %v32, %v987
    %v989 = vand.u32 %v988, 4294901760
    %v990 = vsub.f32 %v988, %v989
    %v991 = vand.u32 %v990, 4294901760
    %992 = vmatpush1.msra.mxu0 %v991
    %993 = vmatprep.subr.mxu0 0.0
    %v994 = vand.u32 %v33, 4294901760
    %v995 = vsub.f32 %v33, %v994
    %v996 = vand.u32 %v995, 4294901760
    %v997 = vsub.f32 %v995, %v996
    %v998 = vand.u32 %v997, 4294901760
    %999 = vmatpush1.msra.mxu0 %v998
    %1000 = vmatprep.subr.mxu0 0.0
    %v1001 = vand.u32 %v34, 4294901760
    %v1002 = vsub.f32 %v34, %v1001
    %v1003 = vand.u32 %v1002, 4294901760
    %v1004 = vsub.f32 %v1002, %v1003
    %v1005 = vand.u32 %v1004, 4294901760
    %1006 = vmatpush1.msra.mxu0 %v1005
    %1007 = vmatprep.subr.mxu0 0.0
    %v1008 = vand.u32 %v35, 4294901760
    %v1009 = vsub.f32 %v35, %v1008
    %v1010 = vand.u32 %v1009, 4294901760
    %v1011 = vsub.f32 %v1009, %v1010
    %v1012 = vand.u32 %v1011, 4294901760
    %1013 = vmatpush1.msra.mxu0 %v1012
    %1014 = vmatprep.subr.mxu0 0.0
    %v1015 = vand.u32 %v36, 4294901760
    %v1016 = vsub.f32 %v36, %v1015
    %v1017 = vand.u32 %v1016, 4294901760
    %v1018 = vsub.f32 %v1016, %v1017
    %v1019 = vand.u32 %v1018, 4294901760
    %1020 = vmatpush1.msra.mxu0 %v1019
    %1021 = vmatprep.subr.mxu0 0.0
    %v1022 = vand.u32 %v37, 4294901760
    %v1023 = vsub.f32 %v37, %v1022
    %v1024 = vand.u32 %v1023, 4294901760
    %v1025 = vsub.f32 %v1023, %v1024
    %v1026 = vand.u32 %v1025, 4294901760
    %1027 = vmatpush1.msra.mxu0 %v1026
    %1028 = vmatprep.subr.mxu0 0.0
    %v1029 = vand.u32 %v38, 4294901760
    %v1030 = vsub.f32 %v38, %v1029
    %v1031 = vand.u32 %v1030, 4294901760
    %v1032 = vsub.f32 %v1030, %v1031
    %v1033 = vand.u32 %v1032, 4294901760
    %1034 = vmatpush1.msra.mxu0 %v1033
    %1035 = vmatprep.subr.mxu0 0.0
    %v1036 = vand.u32 %v39, 4294901760
    %v1037 = vsub.f32 %v39, %v1036
    %v1038 = vand.u32 %v1037, 4294901760
    %v1039 = vsub.f32 %v1037, %v1038
    %v1040 = vand.u32 %v1039, 4294901760
    %1041 = vmatpush1.msra.mxu0 %v1040
    %1042 = vmatprep.subr.mxu0 0.0
    %v1043 = vand.u32 %v40, 4294901760
    %v1044 = vsub.f32 %v40, %v1043
    %v1045 = vand.u32 %v1044, 4294901760
    %v1046 = vsub.f32 %v1044, %v1045
    %v1047 = vand.u32 %v1046, 4294901760
    %1048 = vmatpush1.msra.mxu0 %v1047
    %1049 = vmatprep.subr.mxu0 0.0
    %1050 = vmatpush1.msra.mxu0 0.0
    %1051 = vmatprep.subr.mxu0 0.0
    %1052 = vmatpush1.msra.mxu0 0.0
    %1053 = vmatprep.subr.mxu0 0.0
    %1054 = vmatpush1.msra.mxu0 0.0
    %1055 = vmatprep.subr.mxu0 0.0
    %1056 = vmatpush1.msra.mxu0 0.0
    %1057 = vmatprep.subr.mxu0 0.0
    %1058 = vmatpush1.msra.mxu0 0.0
    %1059 = vmatprep.subr.mxu0 0.0
    %1060 = vmatpush1.msra.mxu0 0.0
    %1061 = vmatprep.subr.mxu0 0.0
    %1062 = vmatpush1.msra.mxu0 0.0
    %1063 = vmatprep.subr.mxu0 0.0
    %1064 = vmatpush1.msra.mxu0 0.0
    %1065 = vmatprep.subr.mxu0 0.0
    %1066 = vmatpush1.msra.mxu0 0.0
    %1067 = vmatprep.subr.mxu0 0.0
    %1068 = vmatpush1.msra.mxu0 0.0
    %1069 = vmatprep.subr.mxu0 0.0
    %1070 = vmatpush1.msra.mxu0 0.0
    %1071 = vmatprep.subr.mxu0 0.0
    %1072 = vmatpush1.msra.mxu0 0.0
    %1073 = vmatprep.subr.mxu0 0.0
    %1074 = vmatpush1.msra.mxu0 0.0
    %1075 = vmatprep.subr.mxu0 0.0
    %1076 = vmatpush1.msra.mxu0 0.0
    %1077 = vmatprep.subr.mxu0 0.0
    %1078 = vmatpush1.msra.mxu0 0.0
    %1079 = vmatprep.subr.mxu0 0.0
    %1080 = vmatpush1.msra.mxu0 0.0
    %1081 = vmatprep.mubr.f32.mxu0 0.0
    %v1082 = vand.u32 %v812, 4294901760
    %1083 = vmatmul.mubr.f32.gmra.mrb[0].mxu0 %v1082
    %v1084 = vpop.f32.mrb[0].mxu0
    %v1085 = vadd.f32 %v904, %v1084
    %v1086 = vpop.f32.mrb[0].mxu0
    %1087 = vmatprep.mubr.f32.mxu0 0.0
    %v1088 = vand.u32 %v813, 4294901760
    %1089 = vmatmul.mubr.f32.gmra.mrb[0].mxu0 %v1088
    %v1090 = vpop.f32.mrb[0].mxu0
    %v1091 = vadd.f32 %v914, %v1090
    %v1092 = vpop.f32.mrb[0].mxu0
    %1093 = vmatprep.mubr.f32.mxu0 0.0
    %v1094 = vand.u32 %v814, 4294901760
    %1095 = vmatmul.mubr.f32.gmra.mrb[0].mxu0 %v1094
    %v1096 = vpop.f32.mrb[0].mxu0
    %v1097 = vadd.f32 %v924, %v1096
    %v1098 = vpop.f32.mrb[0].mxu0
    %1099 = vmatprep.mubr.f32.mxu0 0.0
    %v1100 = vand.u32 %v815, 4294901760
    %1101 = vmatmul.mubr.f32.gmra.mrb[0].mxu0 %v1100
    %v1102 = vpop.f32.mrb[0].mxu0
    %v1103 = vadd.f32 %v934, %v1102
    %v1104 = vpop.f32.mrb[0].mxu0
    %1105 = vdwg.mxu0
    %1106 = vmatprep.subr.mxu0 0.0
    %v1107 = vand.u32 %v25, 4294901760
    %v1108 = vsub.f32 %v25, %v1107
    %1109 = vmatpush1.msra.mxu0 %v1108
    %1110 = vmatprep.subr.mxu0 0.0
    %v1111 = vand.u32 %v26, 4294901760
    %v1112 = vsub.f32 %v26, %v1111
    %1113 = vmatpush1.msra.mxu0 %v1112
    %1114 = vmatprep.subr.mxu0 0.0
    %v1115 = vand.u32 %v27, 4294901760
    %v1116 = vsub.f32 %v27, %v1115
    %1117 = vmatpush1.msra.mxu0 %v1116
    %1118 = vmatprep.subr.mxu0 0.0
    %v1119 = vand.u32 %v28, 4294901760
    %v1120 = vsub.f32 %v28, %v1119
    %1121 = vmatpush1.msra.mxu0 %v1120
    %1122 = vmatprep.subr.mxu0 0.0
    %v1123 = vand.u32 %v29, 4294901760
    %v1124 = vsub.f32 %v29, %v1123
    %1125 = vmatpush1.msra.mxu0 %v1124
    %1126 = vmatprep.subr.mxu0 0.0
    %v1127 = vand.u32 %v30, 4294901760
    %v1128 = vsub.f32 %v30, %v1127
    %1129 = vmatpush1.msra.mxu0 %v1128
    %1130 = vmatprep.subr.mxu0 0.0
    %v1131 = vand.u32 %v31, 4294901760
    %v1132 = vsub.f32 %v31, %v1131
    %1133 = vmatpush1.msra.mxu0 %v1132
    %1134 = vmatprep.subr.mxu0 0.0
    %v1135 = vand.u32 %v32, 4294901760
    %v1136 = vsub.f32 %v32, %v1135
    %1137 = vmatpush1.msra.mxu0 %v1136
    %1138 = vmatprep.subr.mxu0 0.0
    %v1139 = vand.u32 %v33, 4294901760
    %v1140 = vsub.f32 %v33, %v1139
    %1141 = vmatpush1.msra.mxu0 %v1140
    %1142 = vmatprep.subr.mxu0 0.0
    %v1143 = vand.u32 %v34, 4294901760
    %v1144 = vsub.f32 %v34, %v1143
    %1145 = vmatpush1.msra.mxu0 %v1144
    %1146 = vmatprep.subr.mxu0 0.0
    %v1147 = vand.u32 %v35, 4294901760
    %v1148 = vsub.f32 %v35, %v1147
    %1149 = vmatpush1.msra.mxu0 %v1148
    %1150 = vmatprep.subr.mxu0 0.0
    %v1151 = vand.u32 %v36, 4294901760
    %v1152 = vsub.f32 %v36, %v1151
    %1153 = vmatpush1.msra.mxu0 %v1152
    %1154 = vmatprep.subr.mxu0 0.0
    %v1155 = vand.u32 %v37, 4294901760
    %v1156 = vsub.f32 %v37, %v1155
    %1157 = vmatpush1.msra.mxu0 %v1156
    %1158 = vmatprep.subr.mxu0 0.0
    %v1159 = vand.u32 %v38, 4294901760
    %v1160 = vsub.f32 %v38, %v1159
    %1161 = vmatpush1.msra.mxu0 %v1160
    %1162 = vmatprep.subr.mxu0 0.0
    %v1163 = vand.u32 %v39, 4294901760
    %v1164 = vsub.f32 %v39, %v1163
    %1165 = vmatpush1.msra.mxu0 %v1164
    %1166 = vmatprep.subr.mxu0 0.0
    %v1167 = vand.u32 %v40, 4294901760
    %v1168 = vsub.f32 %v40, %v1167
    %1169 = vmatpush1.msra.mxu0 %v1168
    %1170 = vmatprep.subr.mxu0 0.0
    %1171 = vmatpush1.msra.mxu0 0.0
    %1172 = vmatprep.subr.mxu0 0.0
    %1173 = vmatpush1.msra.mxu0 0.0
    %1174 = vmatprep.subr.mxu0 0.0
    %1175 = vmatpush1.msra.mxu0 0.0
    %1176 = vmatprep.subr.mxu0 0.0
    %1177 = vmatpush1.msra.mxu0 0.0
    %1178 = vmatprep.subr.mxu0 0.0
    %1179 = vmatpush1.msra.mxu0 0.0
    %1180 = vmatprep.subr.mxu0 0.0
    %1181 = vmatpush1.msra.mxu0 0.0
    %1182 = vmatprep.subr.mxu0 0.0
    %1183 = vmatpush1.msra.mxu0 0.0
    %1184 = vmatprep.subr.mxu0 0.0
    %1185 = vmatpush1.msra.mxu0 0.0
    %1186 = vmatprep.subr.mxu0 0.0
    %1187 = vmatpush1.msra.mxu0 0.0
    %1188 = vmatprep.subr.mxu0 0.0
    %1189 = vmatpush1.msra.mxu0 0.0
    %1190 = vmatprep.subr.mxu0 0.0
    %1191 = vmatpush1.msra.mxu0 0.0
    %1192 = vmatprep.subr.mxu0 0.0
    %1193 = vmatpush1.msra.mxu0 0.0
    %1194 = vmatprep.subr.mxu0 0.0
    %1195 = vmatpush1.msra.mxu0 0.0
    %1196 = vmatprep.subr.mxu0 0.0
    %1197 = vmatpush1.msra.mxu0 0.0
    %1198 = vmatprep.subr.mxu0 0.0
    %1199 = vmatpush1.msra.mxu0 0.0
    %1200 = vmatprep.subr.mxu0 0.0
    %1201 = vmatpush1.msra.mxu0 0.0
    %1202 = vmatprep.mubr.f32.mxu0 0.0
    %v1203 = vand.u32 %v812, 4294901760
    %v1204 = vsub.f32 %v812, %v1203
    %1205 = vmatmul.mubr.f32.gmra.mrb[0].mxu0 %v1204
    %v1206 = vpop.f32.mrb[0].mxu0
    %v1207 = vadd.f32 %v1085, %v1206
    %v1208 = vpop.f32.mrb[0].mxu0
    %1209 = vmatprep.mubr.f32.mxu0 0.0
    %v1210 = vand.u32 %v813, 4294901760
    %v1211 = vsub.f32 %v813, %v1210
    %1212 = vmatmul.mubr.f32.gmra.mrb[0].mxu0 %v1211
    %v1213 = vpop.f32.mrb[0].mxu0
    %v1214 = vadd.f32 %v1091, %v1213
    %v1215 = vpop.f32.mrb[0].mxu0
    %1216 = vmatprep.mubr.f32.mxu0 0.0
    %v1217 = vand.u32 %v814, 4294901760
    %v1218 = vsub.f32 %v814, %v1217
    %1219 = vmatmul.mubr.f32.gmra.mrb[0].mxu0 %v1218
    %v1220 = vpop.f32.mrb[0].mxu0
    %v1221 = vadd.f32 %v1097, %v1220
    %v1222 = vpop.f32.mrb[0].mxu0
    %1223 = vmatprep.mubr.f32.mxu0 0.0
    %v1224 = vand.u32 %v815, 4294901760
    %v1225 = vsub.f32 %v815, %v1224
    %1226 = vmatmul.mubr.f32.gmra.mrb[0].mxu0 %v1225
    %v1227 = vpop.f32.mrb[0].mxu0
    %v1228 = vadd.f32 %v1103, %v1227
    %v1229 = vpop.f32.mrb[0].mxu0
    %1230 = vdwg.mxu0
    %1231 = vmatprep.subr.mxu0 0.0
    %v1232 = vand.u32 %v25, 4294901760
    %1233 = vmatpush1.msra.mxu0 %v1232
    %1234 = vmatprep.subr.mxu0 0.0
    %v1235 = vand.u32 %v26, 4294901760
    %1236 = vmatpush1.msra.mxu0 %v1235
    %1237 = vmatprep.subr.mxu0 0.0
    %v1238 = vand.u32 %v27, 4294901760
    %1239 = vmatpush1.msra.mxu0 %v1238
    %1240 = vmatprep.subr.mxu0 0.0
    %v1241 = vand.u32 %v28, 4294901760
    %1242 = vmatpush1.msra.mxu0 %v1241
    %1243 = vmatprep.subr.mxu0 0.0
    %v1244 = vand.u32 %v29, 4294901760
    %1245 = vmatpush1.msra.mxu0 %v1244
    %1246 = vmatprep.subr.mxu0 0.0
    %v1247 = vand.u32 %v30, 4294901760
    %1248 = vmatpush1.msra.mxu0 %v1247
    %1249 = vmatprep.subr.mxu0 0.0
    %v1250 = vand.u32 %v31, 4294901760
    %1251 = vmatpush1.msra.mxu0 %v1250
    %1252 = vmatprep.subr.mxu0 0.0
    %v1253 = vand.u32 %v32, 4294901760
    %1254 = vmatpush1.msra.mxu0 %v1253
    %1255 = vmatprep.subr.mxu0 0.0
    %v1256 = vand.u32 %v33, 4294901760
    %1257 = vmatpush1.msra.mxu0 %v1256
    %1258 = vmatprep.subr.mxu0 0.0
    %v1259 = vand.u32 %v34, 4294901760
    %1260 = vmatpush1.msra.mxu0 %v1259
    %1261 = vmatprep.subr.mxu0 0.0
    %v1262 = vand.u32 %v35, 4294901760
    %1263 = vmatpush1.msra.mxu0 %v1262
    %1264 = vmatprep.subr.mxu0 0.0
    %v1265 = vand.u32 %v36, 4294901760
    %1266 = vmatpush1.msra.mxu0 %v1265
    %1267 = vmatprep.subr.mxu0 0.0
    %v1268 = vand.u32 %v37, 4294901760
    %1269 = vmatpush1.msra.mxu0 %v1268
    %1270 = vmatprep.subr.mxu0 0.0
    %v1271 = vand.u32 %v38, 4294901760
    %1272 = vmatpush1.msra.mxu0 %v1271
    %1273 = vmatprep.subr.mxu0 0.0
    %v1274 = vand.u32 %v39, 4294901760
    %1275 = vmatpush1.msra.mxu0 %v1274
    %1276 = vmatprep.subr.mxu0 0.0
    %v1277 = vand.u32 %v40, 4294901760
    %1278 = vmatpush1.msra.mxu0 %v1277
    %1279 = vmatprep.subr.mxu0 0.0
    %1280 = vmatpush1.msra.mxu0 0.0
    %1281 = vmatprep.subr.mxu0 0.0
    %1282 = vmatpush1.msra.mxu0 0.0
    %1283 = vmatprep.subr.mxu0 0.0
    %1284 = vmatpush1.msra.mxu0 0.0
    %1285 = vmatprep.subr.mxu0 0.0
    %1286 = vmatpush1.msra.mxu0 0.0
    %1287 = vmatprep.subr.mxu0 0.0
    %1288 = vmatpush1.msra.mxu0 0.0
    %1289 = vmatprep.subr.mxu0 0.0
    %1290 = vmatpush1.msra.mxu0 0.0
    %1291 = vmatprep.subr.mxu0 0.0
    %1292 = vmatpush1.msra.mxu0 0.0
    %1293 = vmatprep.subr.mxu0 0.0
    %1294 = vmatpush1.msra.mxu0 0.0
    %1295 = vmatprep.subr.mxu0 0.0
    %1296 = vmatpush1.msra.mxu0 0.0
    %1297 = vmatprep.subr.mxu0 0.0
    %1298 = vmatpush1.msra.mxu0 0.0
    %1299 = vmatprep.subr.mxu0 0.0
    %1300 = vmatpush1.msra.mxu0 0.0
    %1301 = vmatprep.subr.mxu0 0.0
    %1302 = vmatpush1.msra.mxu0 0.0
    %1303 = vmatprep.subr.mxu0 0.0
    %1304 = vmatpush1.msra.mxu0 0.0
    %1305 = vmatprep.subr.mxu0 0.0
    %1306 = vmatpush1.msra.mxu0 0.0
    %1307 = vmatprep.subr.mxu0 0.0
    %1308 = vmatpush1.msra.mxu0 0.0
    %1309 = vmatprep.subr.mxu0 0.0
    %1310 = vmatpush1.msra.mxu0 0.0
    %1311 = vmatprep.mubr.f32.mxu0 0.0
    %v1312 = vand.u32 %v812, 4294901760
    %v1313 = vsub.f32 %v812, %v1312
    %v1314 = vand.u32 %v1313, 4294901760
    %1315 = vmatmul.mubr.f32.gmra.mrb[0].mxu0 %v1314
    %v1316 = vpop.f32.mrb[0].mxu0
    %v1317 = vadd.f32 %v1207, %v1316
    %v1318 = vpop.f32.mrb[0].mxu0
    %1319 = vmatprep.mubr.f32.mxu0 0.0
    %v1320 = vand.u32 %v813, 4294901760
    %v1321 = vsub.f32 %v813, %v1320
    %v1322 = vand.u32 %v1321, 4294901760
    %1323 = vmatmul.mubr.f32.gmra.mrb[0].mxu0 %v1322
    %v1324 = vpop.f32.mrb[0].mxu0
    %v1325 = vadd.f32 %v1214, %v1324
    %v1326 = vpop.f32.mrb[0].mxu0
    %1327 = vmatprep.mubr.f32.mxu0 0.0
    %v1328 = vand.u32 %v814, 4294901760
    %v1329 = vsub.f32 %v814, %v1328
    %v1330 = vand.u32 %v1329, 4294901760
    %1331 = vmatmul.mubr.f32.gmra.mrb[0].mxu0 %v1330
    %v1332 = vpop.f32.mrb[0].mxu0
    %v1333 = vadd.f32 %v1221, %v1332
    %v1334 = vpop.f32.mrb[0].mxu0
    %1335 = vmatprep.mubr.f32.mxu0 0.0
    %v1336 = vand.u32 %v815, 4294901760
    %v1337 = vsub.f32 %v815, %v1336
    %v1338 = vand.u32 %v1337, 4294901760
    %1339 = vmatmul.mubr.f32.gmra.mrb[0].mxu0 %v1338
    %v1340 = vpop.f32.mrb[0].mxu0
    %v1341 = vadd.f32 %v1228, %v1340
    %v1342 = vpop.f32.mrb[0].mxu0
    %1343 = vdwg.mxu0
    %1344 = vmatprep.subr.mxu0 0.0
    %v1345 = vand.u32 %v25, 4294901760
    %v1346 = vsub.f32 %v25, %v1345
    %v1347 = vand.u32 %v1346, 4294901760
    %1348 = vmatpush1.msra.mxu0 %v1347
    %1349 = vmatprep.subr.mxu0 0.0
    %v1350 = vand.u32 %v26, 4294901760
    %v1351 = vsub.f32 %v26, %v1350
    %v1352 = vand.u32 %v1351, 4294901760
    %1353 = vmatpush1.msra.mxu0 %v1352
    %1354 = vmatprep.subr.mxu0 0.0
    %v1355 = vand.u32 %v27, 4294901760
    %v1356 = vsub.f32 %v27, %v1355
    %v1357 = vand.u32 %v1356, 4294901760
    %1358 = vmatpush1.msra.mxu0 %v1357
    %1359 = vmatprep.subr.mxu0 0.0
    %v1360 = vand.u32 %v28, 4294901760
    %v1361 = vsub.f32 %v28, %v1360
    %v1362 = vand.u32 %v1361, 4294901760
    %1363 = vmatpush1.msra.mxu0 %v1362
    %1364 = vmatprep.subr.mxu0 0.0
    %v1365 = vand.u32 %v29, 4294901760
    %v1366 = vsub.f32 %v29, %v1365
    %v1367 = vand.u32 %v1366, 4294901760
    %1368 = vmatpush1.msra.mxu0 %v1367
    %1369 = vmatprep.subr.mxu0 0.0
    %v1370 = vand.u32 %v30, 4294901760
    %v1371 = vsub.f32 %v30, %v1370
    %v1372 = vand.u32 %v1371, 4294901760
    %1373 = vmatpush1.msra.mxu0 %v1372
    %1374 = vmatprep.subr.mxu0 0.0
    %v1375 = vand.u32 %v31, 4294901760
    %v1376 = vsub.f32 %v31, %v1375
    %v1377 = vand.u32 %v1376, 4294901760
    %1378 = vmatpush1.msra.mxu0 %v1377
    %1379 = vmatprep.subr.mxu0 0.0
    %v1380 = vand.u32 %v32, 4294901760
    %v1381 = vsub.f32 %v32, %v1380
    %v1382 = vand.u32 %v1381, 4294901760
    %1383 = vmatpush1.msra.mxu0 %v1382
    %1384 = vmatprep.subr.mxu0 0.0
    %v1385 = vand.u32 %v33, 4294901760
    %v1386 = vsub.f32 %v33, %v1385
    %v1387 = vand.u32 %v1386, 4294901760
    %1388 = vmatpush1.msra.mxu0 %v1387
    %1389 = vmatprep.subr.mxu0 0.0
    %v1390 = vand.u32 %v34, 4294901760
    %v1391 = vsub.f32 %v34, %v1390
    %v1392 = vand.u32 %v1391, 4294901760
    %1393 = vmatpush1.msra.mxu0 %v1392
    %1394 = vmatprep.subr.mxu0 0.0
    %v1395 = vand.u32 %v35, 4294901760
    %v1396 = vsub.f32 %v35, %v1395
    %v1397 = vand.u32 %v1396, 4294901760
    %1398 = vmatpush1.msra.mxu0 %v1397
    %1399 = vmatprep.subr.mxu0 0.0
    %v1400 = vand.u32 %v36, 4294901760
    %v1401 = vsub.f32 %v36, %v1400
    %v1402 = vand.u32 %v1401, 4294901760
    %1403 = vmatpush1.msra.mxu0 %v1402
    %1404 = vmatprep.subr.mxu0 0.0
    %v1405 = vand.u32 %v37, 4294901760
    %v1406 = vsub.f32 %v37, %v1405
    %v1407 = vand.u32 %v1406, 4294901760
    %1408 = vmatpush1.msra.mxu0 %v1407
    %1409 = vmatprep.subr.mxu0 0.0
    %v1410 = vand.u32 %v38, 4294901760
    %v1411 = vsub.f32 %v38, %v1410
    %v1412 = vand.u32 %v1411, 4294901760
    %1413 = vmatpush1.msra.mxu0 %v1412
    %1414 = vmatprep.subr.mxu0 0.0
    %v1415 = vand.u32 %v39, 4294901760
    %v1416 = vsub.f32 %v39, %v1415
    %v1417 = vand.u32 %v1416, 4294901760
    %1418 = vmatpush1.msra.mxu0 %v1417
    %1419 = vmatprep.subr.mxu0 0.0
    %v1420 = vand.u32 %v40, 4294901760
    %v1421 = vsub.f32 %v40, %v1420
    %v1422 = vand.u32 %v1421, 4294901760
    %1423 = vmatpush1.msra.mxu0 %v1422
    %1424 = vmatprep.subr.mxu0 0.0
    %1425 = vmatpush1.msra.mxu0 0.0
    %1426 = vmatprep.subr.mxu0 0.0
    %1427 = vmatpush1.msra.mxu0 0.0
    %1428 = vmatprep.subr.mxu0 0.0
    %1429 = vmatpush1.msra.mxu0 0.0
    %1430 = vmatprep.subr.mxu0 0.0
    %1431 = vmatpush1.msra.mxu0 0.0
    %1432 = vmatprep.subr.mxu0 0.0
    %1433 = vmatpush1.msra.mxu0 0.0
    %1434 = vmatprep.subr.mxu0 0.0
    %1435 = vmatpush1.msra.mxu0 0.0
    %1436 = vmatprep.subr.mxu0 0.0
    %1437 = vmatpush1.msra.mxu0 0.0
    %1438 = vmatprep.subr.mxu0 0.0
    %1439 = vmatpush1.msra.mxu0 0.0
    %1440 = vmatprep.subr.mxu0 0.0
    %1441 = vmatpush1.msra.mxu0 0.0
    %1442 = vmatprep.subr.mxu0 0.0
    %1443 = vmatpush1.msra.mxu0 0.0
    %1444 = vmatprep.subr.mxu0 0.0
    %1445 = vmatpush1.msra.mxu0 0.0
    %1446 = vmatprep.subr.mxu0 0.0
    %1447 = vmatpush1.msra.mxu0 0.0
    %1448 = vmatprep.subr.mxu0 0.0
    %1449 = vmatpush1.msra.mxu0 0.0
    %1450 = vmatprep.subr.mxu0 0.0
    %1451 = vmatpush1.msra.mxu0 0.0
    %1452 = vmatprep.subr.mxu0 0.0
    %1453 = vmatpush1.msra.mxu0 0.0
    %1454 = vmatprep.subr.mxu0 0.0
    %1455 = vmatpush1.msra.mxu0 0.0
    %1456 = vmatprep.mubr.f32.mxu0 0.0
    %v1457 = vand.u32 %v812, 4294901760
    %1458 = vmatmul.mubr.f32.gmra.mrb[0].mxu0 %v1457
    %v1459 = vpop.f32.mrb[0].mxu0
    %v1460 = vadd.f32 %v1317, %v1459
    %v1461 = vpop.f32.mrb[0].mxu0
    %1462 = vmatprep.mubr.f32.mxu0 0.0
    %v1463 = vand.u32 %v813, 4294901760
    %1464 = vmatmul.mubr.f32.gmra.mrb[0].mxu0 %v1463
    %v1465 = vpop.f32.mrb[0].mxu0
    %v1466 = vadd.f32 %v1325, %v1465
    %v1467 = vpop.f32.mrb[0].mxu0
    %1468 = vmatprep.mubr.f32.mxu0 0.0
    %v1469 = vand.u32 %v814, 4294901760
    %1470 = vmatmul.mubr.f32.gmra.mrb[0].mxu0 %v1469
    %v1471 = vpop.f32.mrb[0].mxu0
    %v1472 = vadd.f32 %v1333, %v1471
    %v1473 = vpop.f32.mrb[0].mxu0
    %1474 = vmatprep.mubr.f32.mxu0 0.0
    %v1475 = vand.u32 %v815, 4294901760
    %1476 = vmatmul.mubr.f32.gmra.mrb[0].mxu0 %v1475
    %v1477 = vpop.f32.mrb[0].mxu0
    %v1478 = vadd.f32 %v1341, %v1477
    %v1479 = vpop.f32.mrb[0].mxu0
    %1480 = vdwg.mxu0
    %1481 = vmatprep.subr.mxu0 0.0
    %v1482 = vand.u32 %v25, 4294901760
    %1483 = vmatpush1.msra.mxu0 %v1482
    %1484 = vmatprep.subr.mxu0 0.0
    %v1485 = vand.u32 %v26, 4294901760
    %1486 = vmatpush1.msra.mxu0 %v1485
    %1487 = vmatprep.subr.mxu0 0.0
    %v1488 = vand.u32 %v27, 4294901760
    %1489 = vmatpush1.msra.mxu0 %v1488
    %1490 = vmatprep.subr.mxu0 0.0
    %v1491 = vand.u32 %v28, 4294901760
    %1492 = vmatpush1.msra.mxu0 %v1491
    %1493 = vmatprep.subr.mxu0 0.0
    %v1494 = vand.u32 %v29, 4294901760
    %1495 = vmatpush1.msra.mxu0 %v1494
    %1496 = vmatprep.subr.mxu0 0.0
    %v1497 = vand.u32 %v30, 4294901760
    %1498 = vmatpush1.msra.mxu0 %v1497
    %1499 = vmatprep.subr.mxu0 0.0
    %v1500 = vand.u32 %v31, 4294901760
    %1501 = vmatpush1.msra.mxu0 %v1500
    %1502 = vmatprep.subr.mxu0 0.0
    %v1503 = vand.u32 %v32, 4294901760
    %1504 = vmatpush1.msra.mxu0 %v1503
    %1505 = vmatprep.subr.mxu0 0.0
    %v1506 = vand.u32 %v33, 4294901760
    %1507 = vmatpush1.msra.mxu0 %v1506
    %1508 = vmatprep.subr.mxu0 0.0
    %v1509 = vand.u32 %v34, 4294901760
    %1510 = vmatpush1.msra.mxu0 %v1509
    %1511 = vmatprep.subr.mxu0 0.0
    %v1512 = vand.u32 %v35, 4294901760
    %1513 = vmatpush1.msra.mxu0 %v1512
    %1514 = vmatprep.subr.mxu0 0.0
    %v1515 = vand.u32 %v36, 4294901760
    %1516 = vmatpush1.msra.mxu0 %v1515
    %1517 = vmatprep.subr.mxu0 0.0
    %v1518 = vand.u32 %v37, 4294901760
    %1519 = vmatpush1.msra.mxu0 %v1518
    %1520 = vmatprep.subr.mxu0 0.0
    %v1521 = vand.u32 %v38, 4294901760
    %1522 = vmatpush1.msra.mxu0 %v1521
    %1523 = vmatprep.subr.mxu0 0.0
    %v1524 = vand.u32 %v39, 4294901760
    %1525 = vmatpush1.msra.mxu0 %v1524
    %1526 = vmatprep.subr.mxu0 0.0
    %v1527 = vand.u32 %v40, 4294901760
    %1528 = vmatpush1.msra.mxu0 %v1527
    %1529 = vmatprep.subr.mxu0 0.0
    %1530 = vmatpush1.msra.mxu0 0.0
    %1531 = vmatprep.subr.mxu0 0.0
    %1532 = vmatpush1.msra.mxu0 0.0
    %1533 = vmatprep.subr.mxu0 0.0
    %1534 = vmatpush1.msra.mxu0 0.0
    %1535 = vmatprep.subr.mxu0 0.0
    %1536 = vmatpush1.msra.mxu0 0.0
    %1537 = vmatprep.subr.mxu0 0.0
    %1538 = vmatpush1.msra.mxu0 0.0
    %1539 = vmatprep.subr.mxu0 0.0
    %1540 = vmatpush1.msra.mxu0 0.0
    %1541 = vmatprep.subr.mxu0 0.0
    %1542 = vmatpush1.msra.mxu0 0.0
    %1543 = vmatprep.subr.mxu0 0.0
    %1544 = vmatpush1.msra.mxu0 0.0
    %1545 = vmatprep.subr.mxu0 0.0
    %1546 = vmatpush1.msra.mxu0 0.0
    %1547 = vmatprep.subr.mxu0 0.0
    %1548 = vmatpush1.msra.mxu0 0.0
    %1549 = vmatprep.subr.mxu0 0.0
    %1550 = vmatpush1.msra.mxu0 0.0
    %1551 = vmatprep.subr.mxu0 0.0
    %1552 = vmatpush1.msra.mxu0 0.0
    %1553 = vmatprep.subr.mxu0 0.0
    %1554 = vmatpush1.msra.mxu0 0.0
    %1555 = vmatprep.subr.mxu0 0.0
    %1556 = vmatpush1.msra.mxu0 0.0
    %1557 = vmatprep.subr.mxu0 0.0
    %1558 = vmatpush1.msra.mxu0 0.0
    %1559 = vmatprep.subr.mxu0 0.0
    %1560 = vmatpush1.msra.mxu0 0.0
    %1561 = vmatprep.mubr.f32.mxu0 0.0
    %v1562 = vand.u32 %v812, 4294901760
    %1563 = vmatmul.mubr.f32.gmra.mrb[0].mxu0 %v1562
    %v1564 = vpop.f32.mrb[0].mxu0
    %v1565 = vadd.f32 %v1460, %v1564
    %v1566 = vpop.f32.mrb[0].mxu0
    %1567 = vmatprep.mubr.f32.mxu0 0.0
    %v1568 = vand.u32 %v813, 4294901760
    %1569 = vmatmul.mubr.f32.gmra.mrb[0].mxu0 %v1568
    %v1570 = vpop.f32.mrb[0].mxu0
    %v1571 = vadd.f32 %v1466, %v1570
    %v1572 = vpop.f32.mrb[0].mxu0
    %1573 = vmatprep.mubr.f32.mxu0 0.0
    %v1574 = vand.u32 %v814, 4294901760
    %1575 = vmatmul.mubr.f32.gmra.mrb[0].mxu0 %v1574
    %v1576 = vpop.f32.mrb[0].mxu0
    %v1577 = vadd.f32 %v1472, %v1576
    %v1578 = vpop.f32.mrb[0].mxu0
    %1579 = vmatprep.mubr.f32.mxu0 0.0
    %v1580 = vand.u32 %v815, 4294901760
    %1581 = vmatmul.mubr.f32.gmra.mrb[0].mxu0 %v1580
    %v1582 = vpop.f32.mrb[0].mxu0
    %v1583 = vadd.f32 %v1478, %v1582
    %v1584 = vpop.f32.mrb[0].mxu0
    %1585 = vdwg.mxu0
    %v1586 = vmul.f32 %v791, 0.03125
    %v1587 = vmul.f32 %v797, 0.03125
    %v1588 = vmul.f32 %v803, 0.03125
    %v1589 = vmul.f32 %v809, 0.03125
    %v1590 = vmul.f32 %v1565, 0.03125
    %v1591 = vmul.f32 %v1571, 0.03125
    %v1592 = vmul.f32 %v1577, 0.03125
    %v1593 = vmul.f32 %v1583, 0.03125
    %v1594 = vmul.f32 %v1586, %v1586
    %v1595 = vmul.f32 %v1587, %v1587
    %v1596 = vmul.f32 %v1588, %v1588
    %v1597 = vmul.f32 %v1589, %v1589
    %v1598 = vsub.f32 %v1590, %v1594
    %v1599 = vsub.f32 %v1591, %v1595
    %v1600 = vsub.f32 %v1592, %v1596
    %v1601 = vsub.f32 %v1593, %v1597
    %v1602 = vmax.f32 %v1598, 0.0
    %v1603 = vmax.f32 %v1599, 0.0
    %v1604 = vmax.f32 %v1600, 0.0
    %v1605 = vmax.f32 %v1601, 0.0
    %v1606 = vadd.f32 %v1602, 1e-05
    %v1607 = vadd.f32 %v1603, 1e-05
    %v1608 = vadd.f32 %v1604, 1e-05
    %v1609 = vadd.f32 %v1605, 1e-05
    %v1610 = vrsqrt.pop %v1606
    %v1611 = vrsqrt.pop %v1607
    %v1612 = vrsqrt.pop %v1608
    %v1613 = vrsqrt.pop %v1609
    %vm1614 = vcmask 31744
    %v1616 = vsel %vm1614, %v1610, 0
    %v1619 = vsel %vm1614, %v1611, 0
    %v1622 = vsel %vm1614, %v1612, 0
    %v1625 = vsel %vm1614, %v1613, 0
    %vm1627 = vcmask 1043456
    %v1629 = vsel %vm1627, %v41, 0
    %1631 = vmatprep.subr.mxu0 0.0
    %v1632 = vand.u32 %v1629, 4294901760
    %1633 = vmatpush1.msra.mxu0 %v1632
    %1634 = vmatprep.subr.mxu0 0.0
    %1635 = vmatpush1.msra.mxu0 0.0
    %1636 = vmatprep.subr.mxu0 0.0
    %1637 = vmatpush1.msra.mxu0 0.0
    %1638 = vmatprep.subr.mxu0 0.0
    %1639 = vmatpush1.msra.mxu0 0.0
    %1640 = vmatprep.subr.mxu0 0.0
    %1641 = vmatpush1.msra.mxu0 0.0
    %1642 = vmatprep.subr.mxu0 0.0
    %1643 = vmatpush1.msra.mxu0 0.0
    %1644 = vmatprep.subr.mxu0 0.0
    %1645 = vmatpush1.msra.mxu0 0.0
    %1646 = vmatprep.subr.mxu0 0.0
    %1647 = vmatpush1.msra.mxu0 0.0
    %1648 = vmatprep.subr.mxu0 0.0
    %1649 = vmatpush1.msra.mxu0 0.0
    %1650 = vmatprep.subr.mxu0 0.0
    %1651 = vmatpush1.msra.mxu0 0.0
    %1652 = vmatprep.subr.mxu0 0.0
    %1653 = vmatpush1.msra.mxu0 0.0
    %1654 = vmatprep.subr.mxu0 0.0
    %1655 = vmatpush1.msra.mxu0 0.0
    %1656 = vmatprep.subr.mxu0 0.0
    %1657 = vmatpush1.msra.mxu0 0.0
    %1658 = vmatprep.subr.mxu0 0.0
    %1659 = vmatpush1.msra.mxu0 0.0
    %1660 = vmatprep.subr.mxu0 0.0
    %1661 = vmatpush1.msra.mxu0 0.0
    %1662 = vmatprep.subr.mxu0 0.0
    %1663 = vmatpush1.msra.mxu0 0.0
    %1664 = vmatprep.subr.mxu0 0.0
    %1665 = vmatpush1.msra.mxu0 0.0
    %1666 = vmatprep.subr.mxu0 0.0
    %1667 = vmatpush1.msra.mxu0 0.0
    %1668 = vmatprep.subr.mxu0 0.0
    %1669 = vmatpush1.msra.mxu0 0.0
    %1670 = vmatprep.subr.mxu0 0.0
    %1671 = vmatpush1.msra.mxu0 0.0
    %1672 = vmatprep.subr.mxu0 0.0
    %1673 = vmatpush1.msra.mxu0 0.0
    %1674 = vmatprep.subr.mxu0 0.0
    %1675 = vmatpush1.msra.mxu0 0.0
    %1676 = vmatprep.subr.mxu0 0.0
    %1677 = vmatpush1.msra.mxu0 0.0
    %1678 = vmatprep.subr.mxu0 0.0
    %1679 = vmatpush1.msra.mxu0 0.0
    %1680 = vmatprep.subr.mxu0 0.0
    %1681 = vmatpush1.msra.mxu0 0.0
    %1682 = vmatprep.subr.mxu0 0.0
    %1683 = vmatpush1.msra.mxu0 0.0
    %1684 = vmatprep.subr.mxu0 0.0
    %1685 = vmatpush1.msra.mxu0 0.0
    %1686 = vmatprep.subr.mxu0 0.0
    %1687 = vmatpush1.msra.mxu0 0.0
    %1688 = vmatprep.subr.mxu0 0.0
    %1689 = vmatpush1.msra.mxu0 0.0
    %1690 = vmatprep.subr.mxu0 0.0
    %1691 = vmatpush1.msra.mxu0 0.0
    %1692 = vmatprep.subr.mxu0 0.0
    %1693 = vmatpush1.msra.mxu0 0.0
    %1694 = vmatprep.subr.mxu0 0.0
    %1695 = vmatpush1.msra.mxu0 0.0
    %1696 = vmatprep.mubr.f32.mxu0 0.0
    %v1697 = vand.u32 %v1616, 4294901760
    %v1698 = vsub.f32 %v1616, %v1697
    %v1699 = vand.u32 %v1698, 4294901760
    %v1700 = vsub.f32 %v1698, %v1699
    %v1701 = vand.u32 %v1700, 4294901760
    %1702 = vmatmul.mubr.f32.gmra.mrb[0].mxu0 %v1701
    %v1703 = vpop.f32.mrb[0].mxu0
    %v1704 = vadd.f32 0.0, %v1703
    %v1705 = vpop.f32.mrb[0].mxu0
    %1706 = vmatprep.mubr.f32.mxu0 0.0
    %v1707 = vand.u32 %v1619, 4294901760
    %v1708 = vsub.f32 %v1619, %v1707
    %v1709 = vand.u32 %v1708, 4294901760
    %v1710 = vsub.f32 %v1708, %v1709
    %v1711 = vand.u32 %v1710, 4294901760
    %1712 = vmatmul.mubr.f32.gmra.mrb[0].mxu0 %v1711
    %v1713 = vpop.f32.mrb[0].mxu0
    %v1714 = vadd.f32 0.0, %v1713
    %v1715 = vpop.f32.mrb[0].mxu0
    %1716 = vmatprep.mubr.f32.mxu0 0.0
    %v1717 = vand.u32 %v1622, 4294901760
    %v1718 = vsub.f32 %v1622, %v1717
    %v1719 = vand.u32 %v1718, 4294901760
    %v1720 = vsub.f32 %v1718, %v1719
    %v1721 = vand.u32 %v1720, 4294901760
    %1722 = vmatmul.mubr.f32.gmra.mrb[0].mxu0 %v1721
    %v1723 = vpop.f32.mrb[0].mxu0
    %v1724 = vadd.f32 0.0, %v1723
    %v1725 = vpop.f32.mrb[0].mxu0
    %1726 = vmatprep.mubr.f32.mxu0 0.0
    %v1727 = vand.u32 %v1625, 4294901760
    %v1728 = vsub.f32 %v1625, %v1727
    %v1729 = vand.u32 %v1728, 4294901760
    %v1730 = vsub.f32 %v1728, %v1729
    %v1731 = vand.u32 %v1730, 4294901760
    %1732 = vmatmul.mubr.f32.gmra.mrb[0].mxu0 %v1731
    %v1733 = vpop.f32.mrb[0].mxu0
    %v1734 = vadd.f32 0.0, %v1733
    %v1735 = vpop.f32.mrb[0].mxu0
    %1736 = vdwg.mxu0
    %1737 = vmatprep.subr.mxu0 0.0
    %v1738 = vand.u32 %v1629, 4294901760
    %v1739 = vsub.f32 %v1629, %v1738
    %v1740 = vand.u32 %v1739, 4294901760
    %v1741 = vsub.f32 %v1739, %v1740
    %v1742 = vand.u32 %v1741, 4294901760
    %1743 = vmatpush1.msra.mxu0 %v1742
    %1744 = vmatprep.subr.mxu0 0.0
    %1745 = vmatpush1.msra.mxu0 0.0
    %1746 = vmatprep.subr.mxu0 0.0
    %1747 = vmatpush1.msra.mxu0 0.0
    %1748 = vmatprep.subr.mxu0 0.0
    %1749 = vmatpush1.msra.mxu0 0.0
    %1750 = vmatprep.subr.mxu0 0.0
    %1751 = vmatpush1.msra.mxu0 0.0
    %1752 = vmatprep.subr.mxu0 0.0
    %1753 = vmatpush1.msra.mxu0 0.0
    %1754 = vmatprep.subr.mxu0 0.0
    %1755 = vmatpush1.msra.mxu0 0.0
    %1756 = vmatprep.subr.mxu0 0.0
    %1757 = vmatpush1.msra.mxu0 0.0
    %1758 = vmatprep.subr.mxu0 0.0
    %1759 = vmatpush1.msra.mxu0 0.0
    %1760 = vmatprep.subr.mxu0 0.0
    %1761 = vmatpush1.msra.mxu0 0.0
    %1762 = vmatprep.subr.mxu0 0.0
    %1763 = vmatpush1.msra.mxu0 0.0
    %1764 = vmatprep.subr.mxu0 0.0
    %1765 = vmatpush1.msra.mxu0 0.0
    %1766 = vmatprep.subr.mxu0 0.0
    %1767 = vmatpush1.msra.mxu0 0.0
    %1768 = vmatprep.subr.mxu0 0.0
    %1769 = vmatpush1.msra.mxu0 0.0
    %1770 = vmatprep.subr.mxu0 0.0
    %1771 = vmatpush1.msra.mxu0 0.0
    %1772 = vmatprep.subr.mxu0 0.0
    %1773 = vmatpush1.msra.mxu0 0.0
    %1774 = vmatprep.subr.mxu0 0.0
    %1775 = vmatpush1.msra.mxu0 0.0
    %1776 = vmatprep.subr.mxu0 0.0
    %1777 = vmatpush1.msra.mxu0 0.0
    %1778 = vmatprep.subr.mxu0 0.0
    %1779 = vmatpush1.msra.mxu0 0.0
    %1780 = vmatprep.subr.mxu0 0.0
    %1781 = vmatpush1.msra.mxu0 0.0
    %1782 = vmatprep.subr.mxu0 0.0
    %1783 = vmatpush1.msra.mxu0 0.0
    %1784 = vmatprep.subr.mxu0 0.0
    %1785 = vmatpush1.msra.mxu0 0.0
    %1786 = vmatprep.subr.mxu0 0.0
    %1787 = vmatpush1.msra.mxu0 0.0
    %1788 = vmatprep.subr.mxu0 0.0
    %1789 = vmatpush1.msra.mxu0 0.0
    %1790 = vmatprep.subr.mxu0 0.0
    %1791 = vmatpush1.msra.mxu0 0.0
    %1792 = vmatprep.subr.mxu0 0.0
    %1793 = vmatpush1.msra.mxu0 0.0
    %1794 = vmatprep.subr.mxu0 0.0
    %1795 = vmatpush1.msra.mxu0 0.0
    %1796 = vmatprep.subr.mxu0 0.0
    %1797 = vmatpush1.msra.mxu0 0.0
    %1798 = vmatprep.subr.mxu0 0.0
    %1799 = vmatpush1.msra.mxu0 0.0
    %1800 = vmatprep.subr.mxu0 0.0
    %1801 = vmatpush1.msra.mxu0 0.0
    %1802 = vmatprep.subr.mxu0 0.0
    %1803 = vmatpush1.msra.mxu0 0.0
    %1804 = vmatprep.subr.mxu0 0.0
    %1805 = vmatpush1.msra.mxu0 0.0
    %1806 = vmatprep.mubr.f32.mxu0 0.0
    %v1807 = vand.u32 %v1616, 4294901760
    %1808 = vmatmul.mubr.f32.gmra.mrb[0].mxu0 %v1807
    %v1809 = vpop.f32.mrb[0].mxu0
    %v1810 = vadd.f32 %v1704, %v1809
    %v1811 = vpop.f32.mrb[0].mxu0
    %1812 = vmatprep.mubr.f32.mxu0 0.0
    %v1813 = vand.u32 %v1619, 4294901760
    %1814 = vmatmul.mubr.f32.gmra.mrb[0].mxu0 %v1813
    %v1815 = vpop.f32.mrb[0].mxu0
    %v1816 = vadd.f32 %v1714, %v1815
    %v1817 = vpop.f32.mrb[0].mxu0
    %1818 = vmatprep.mubr.f32.mxu0 0.0
    %v1819 = vand.u32 %v1622, 4294901760
    %1820 = vmatmul.mubr.f32.gmra.mrb[0].mxu0 %v1819
    %v1821 = vpop.f32.mrb[0].mxu0
    %v1822 = vadd.f32 %v1724, %v1821
    %v1823 = vpop.f32.mrb[0].mxu0
    %1824 = vmatprep.mubr.f32.mxu0 0.0
    %v1825 = vand.u32 %v1625, 4294901760
    %1826 = vmatmul.mubr.f32.gmra.mrb[0].mxu0 %v1825
    %v1827 = vpop.f32.mrb[0].mxu0
    %v1828 = vadd.f32 %v1734, %v1827
    %v1829 = vpop.f32.mrb[0].mxu0
    %1830 = vdwg.mxu0
    %1831 = vmatprep.subr.mxu0 0.0
    %v1832 = vand.u32 %v1629, 4294901760
    %v1833 = vsub.f32 %v1629, %v1832
    %1834 = vmatpush1.msra.mxu0 %v1833
    %1835 = vmatprep.subr.mxu0 0.0
    %1836 = vmatpush1.msra.mxu0 0.0
    %1837 = vmatprep.subr.mxu0 0.0
    %1838 = vmatpush1.msra.mxu0 0.0
    %1839 = vmatprep.subr.mxu0 0.0
    %1840 = vmatpush1.msra.mxu0 0.0
    %1841 = vmatprep.subr.mxu0 0.0
    %1842 = vmatpush1.msra.mxu0 0.0
    %1843 = vmatprep.subr.mxu0 0.0
    %1844 = vmatpush1.msra.mxu0 0.0
    %1845 = vmatprep.subr.mxu0 0.0
    %1846 = vmatpush1.msra.mxu0 0.0
    %1847 = vmatprep.subr.mxu0 0.0
    %1848 = vmatpush1.msra.mxu0 0.0
    %1849 = vmatprep.subr.mxu0 0.0
    %1850 = vmatpush1.msra.mxu0 0.0
    %1851 = vmatprep.subr.mxu0 0.0
    %1852 = vmatpush1.msra.mxu0 0.0
    %1853 = vmatprep.subr.mxu0 0.0
    %1854 = vmatpush1.msra.mxu0 0.0
    %1855 = vmatprep.subr.mxu0 0.0
    %1856 = vmatpush1.msra.mxu0 0.0
    %1857 = vmatprep.subr.mxu0 0.0
    %1858 = vmatpush1.msra.mxu0 0.0
    %1859 = vmatprep.subr.mxu0 0.0
    %1860 = vmatpush1.msra.mxu0 0.0
    %1861 = vmatprep.subr.mxu0 0.0
    %1862 = vmatpush1.msra.mxu0 0.0
    %1863 = vmatprep.subr.mxu0 0.0
    %1864 = vmatpush1.msra.mxu0 0.0
    %1865 = vmatprep.subr.mxu0 0.0
    %1866 = vmatpush1.msra.mxu0 0.0
    %1867 = vmatprep.subr.mxu0 0.0
    %1868 = vmatpush1.msra.mxu0 0.0
    %1869 = vmatprep.subr.mxu0 0.0
    %1870 = vmatpush1.msra.mxu0 0.0
    %1871 = vmatprep.subr.mxu0 0.0
    %1872 = vmatpush1.msra.mxu0 0.0
    %1873 = vmatprep.subr.mxu0 0.0
    %1874 = vmatpush1.msra.mxu0 0.0
    %1875 = vmatprep.subr.mxu0 0.0
    %1876 = vmatpush1.msra.mxu0 0.0
    %1877 = vmatprep.subr.mxu0 0.0
    %1878 = vmatpush1.msra.mxu0 0.0
    %1879 = vmatprep.subr.mxu0 0.0
    %1880 = vmatpush1.msra.mxu0 0.0
    %1881 = vmatprep.subr.mxu0 0.0
    %1882 = vmatpush1.msra.mxu0 0.0
    %1883 = vmatprep.subr.mxu0 0.0
    %1884 = vmatpush1.msra.mxu0 0.0
    %1885 = vmatprep.subr.mxu0 0.0
    %1886 = vmatpush1.msra.mxu0 0.0
    %1887 = vmatprep.subr.mxu0 0.0
    %1888 = vmatpush1.msra.mxu0 0.0
    %1889 = vmatprep.subr.mxu0 0.0
    %1890 = vmatpush1.msra.mxu0 0.0
    %1891 = vmatprep.subr.mxu0 0.0
    %1892 = vmatpush1.msra.mxu0 0.0
    %1893 = vmatprep.subr.mxu0 0.0
    %1894 = vmatpush1.msra.mxu0 0.0
    %1895 = vmatprep.subr.mxu0 0.0
    %1896 = vmatpush1.msra.mxu0 0.0
    %1897 = vmatprep.mubr.f32.mxu0 0.0
    %v1898 = vand.u32 %v1616, 4294901760
    %v1899 = vsub.f32 %v1616, %v1898
    %1900 = vmatmul.mubr.f32.gmra.mrb[0].mxu0 %v1899
    %v1901 = vpop.f32.mrb[0].mxu0
    %v1902 = vadd.f32 %v1810, %v1901
    %v1903 = vpop.f32.mrb[0].mxu0
    %1904 = vmatprep.mubr.f32.mxu0 0.0
    %v1905 = vand.u32 %v1619, 4294901760
    %v1906 = vsub.f32 %v1619, %v1905
    %1907 = vmatmul.mubr.f32.gmra.mrb[0].mxu0 %v1906
    %v1908 = vpop.f32.mrb[0].mxu0
    %v1909 = vadd.f32 %v1816, %v1908
    %v1910 = vpop.f32.mrb[0].mxu0
    %1911 = vmatprep.mubr.f32.mxu0 0.0
    %v1912 = vand.u32 %v1622, 4294901760
    %v1913 = vsub.f32 %v1622, %v1912
    %1914 = vmatmul.mubr.f32.gmra.mrb[0].mxu0 %v1913
    %v1915 = vpop.f32.mrb[0].mxu0
    %v1916 = vadd.f32 %v1822, %v1915
    %v1917 = vpop.f32.mrb[0].mxu0
    %1918 = vmatprep.mubr.f32.mxu0 0.0
    %v1919 = vand.u32 %v1625, 4294901760
    %v1920 = vsub.f32 %v1625, %v1919
    %1921 = vmatmul.mubr.f32.gmra.mrb[0].mxu0 %v1920
    %v1922 = vpop.f32.mrb[0].mxu0
    %v1923 = vadd.f32 %v1828, %v1922
    %v1924 = vpop.f32.mrb[0].mxu0
    %1925 = vdwg.mxu0
    %1926 = vmatprep.subr.mxu0 0.0
    %v1927 = vand.u32 %v1629, 4294901760
    %1928 = vmatpush1.msra.mxu0 %v1927
    %1929 = vmatprep.subr.mxu0 0.0
    %1930 = vmatpush1.msra.mxu0 0.0
    %1931 = vmatprep.subr.mxu0 0.0
    %1932 = vmatpush1.msra.mxu0 0.0
    %1933 = vmatprep.subr.mxu0 0.0
    %1934 = vmatpush1.msra.mxu0 0.0
    %1935 = vmatprep.subr.mxu0 0.0
    %1936 = vmatpush1.msra.mxu0 0.0
    %1937 = vmatprep.subr.mxu0 0.0
    %1938 = vmatpush1.msra.mxu0 0.0
    %1939 = vmatprep.subr.mxu0 0.0
    %1940 = vmatpush1.msra.mxu0 0.0
    %1941 = vmatprep.subr.mxu0 0.0
    %1942 = vmatpush1.msra.mxu0 0.0
    %1943 = vmatprep.subr.mxu0 0.0
    %1944 = vmatpush1.msra.mxu0 0.0
    %1945 = vmatprep.subr.mxu0 0.0
    %1946 = vmatpush1.msra.mxu0 0.0
    %1947 = vmatprep.subr.mxu0 0.0
    %1948 = vmatpush1.msra.mxu0 0.0
    %1949 = vmatprep.subr.mxu0 0.0
    %1950 = vmatpush1.msra.mxu0 0.0
    %1951 = vmatprep.subr.mxu0 0.0
    %1952 = vmatpush1.msra.mxu0 0.0
    %1953 = vmatprep.subr.mxu0 0.0
    %1954 = vmatpush1.msra.mxu0 0.0
    %1955 = vmatprep.subr.mxu0 0.0
    %1956 = vmatpush1.msra.mxu0 0.0
    %1957 = vmatprep.subr.mxu0 0.0
    %1958 = vmatpush1.msra.mxu0 0.0
    %1959 = vmatprep.subr.mxu0 0.0
    %1960 = vmatpush1.msra.mxu0 0.0
    %1961 = vmatprep.subr.mxu0 0.0
    %1962 = vmatpush1.msra.mxu0 0.0
    %1963 = vmatprep.subr.mxu0 0.0
    %1964 = vmatpush1.msra.mxu0 0.0
    %1965 = vmatprep.subr.mxu0 0.0
    %1966 = vmatpush1.msra.mxu0 0.0
    %1967 = vmatprep.subr.mxu0 0.0
    %1968 = vmatpush1.msra.mxu0 0.0
    %1969 = vmatprep.subr.mxu0 0.0
    %1970 = vmatpush1.msra.mxu0 0.0
    %1971 = vmatprep.subr.mxu0 0.0
    %1972 = vmatpush1.msra.mxu0 0.0
    %1973 = vmatprep.subr.mxu0 0.0
    %1974 = vmatpush1.msra.mxu0 0.0
    %1975 = vmatprep.subr.mxu0 0.0
    %1976 = vmatpush1.msra.mxu0 0.0
    %1977 = vmatprep.subr.mxu0 0.0
    %1978 = vmatpush1.msra.mxu0 0.0
    %1979 = vmatprep.subr.mxu0 0.0
    %1980 = vmatpush1.msra.mxu0 0.0
    %1981 = vmatprep.subr.mxu0 0.0
    %1982 = vmatpush1.msra.mxu0 0.0
    %1983 = vmatprep.subr.mxu0 0.0
    %1984 = vmatpush1.msra.mxu0 0.0
    %1985 = vmatprep.subr.mxu0 0.0
    %1986 = vmatpush1.msra.mxu0 0.0
    %1987 = vmatprep.subr.mxu0 0.0
    %1988 = vmatpush1.msra.mxu0 0.0
    %1989 = vmatprep.subr.mxu0 0.0
    %1990 = vmatpush1.msra.mxu0 0.0
    %1991 = vmatprep.mubr.f32.mxu0 0.0
    %v1992 = vand.u32 %v1616, 4294901760
    %v1993 = vsub.f32 %v1616, %v1992
    %v1994 = vand.u32 %v1993, 4294901760
    %1995 = vmatmul.mubr.f32.gmra.mrb[0].mxu0 %v1994
    %v1996 = vpop.f32.mrb[0].mxu0
    %v1997 = vadd.f32 %v1902, %v1996
    %v1998 = vpop.f32.mrb[0].mxu0
    %1999 = vmatprep.mubr.f32.mxu0 0.0
    %v2000 = vand.u32 %v1619, 4294901760
    %v2001 = vsub.f32 %v1619, %v2000
    %v2002 = vand.u32 %v2001, 4294901760
    %2003 = vmatmul.mubr.f32.gmra.mrb[0].mxu0 %v2002
    %v2004 = vpop.f32.mrb[0].mxu0
    %v2005 = vadd.f32 %v1909, %v2004
    %v2006 = vpop.f32.mrb[0].mxu0
    %2007 = vmatprep.mubr.f32.mxu0 0.0
    %v2008 = vand.u32 %v1622, 4294901760
    %v2009 = vsub.f32 %v1622, %v2008
    %v2010 = vand.u32 %v2009, 4294901760
    %2011 = vmatmul.mubr.f32.gmra.mrb[0].mxu0 %v2010
    %v2012 = vpop.f32.mrb[0].mxu0
    %v2013 = vadd.f32 %v1916, %v2012
    %v2014 = vpop.f32.mrb[0].mxu0
    %2015 = vmatprep.mubr.f32.mxu0 0.0
    %v2016 = vand.u32 %v1625, 4294901760
    %v2017 = vsub.f32 %v1625, %v2016
    %v2018 = vand.u32 %v2017, 4294901760
    %2019 = vmatmul.mubr.f32.gmra.mrb[0].mxu0 %v2018
    %v2020 = vpop.f32.mrb[0].mxu0
    %v2021 = vadd.f32 %v1923, %v2020
    %v2022 = vpop.f32.mrb[0].mxu0
    %2023 = vdwg.mxu0
    %2024 = vmatprep.subr.mxu0 0.0
    %v2025 = vand.u32 %v1629, 4294901760
    %v2026 = vsub.f32 %v1629, %v2025
    %v2027 = vand.u32 %v2026, 4294901760
    %2028 = vmatpush1.msra.mxu0 %v2027
    %2029 = vmatprep.subr.mxu0 0.0
    %2030 = vmatpush1.msra.mxu0 0.0
    %2031 = vmatprep.subr.mxu0 0.0
    %2032 = vmatpush1.msra.mxu0 0.0
    %2033 = vmatprep.subr.mxu0 0.0
    %2034 = vmatpush1.msra.mxu0 0.0
    %2035 = vmatprep.subr.mxu0 0.0
    %2036 = vmatpush1.msra.mxu0 0.0
    %2037 = vmatprep.subr.mxu0 0.0
    %2038 = vmatpush1.msra.mxu0 0.0
    %2039 = vmatprep.subr.mxu0 0.0
    %2040 = vmatpush1.msra.mxu0 0.0
    %2041 = vmatprep.subr.mxu0 0.0
    %2042 = vmatpush1.msra.mxu0 0.0
    %2043 = vmatprep.subr.mxu0 0.0
    %2044 = vmatpush1.msra.mxu0 0.0
    %2045 = vmatprep.subr.mxu0 0.0
    %2046 = vmatpush1.msra.mxu0 0.0
    %2047 = vmatprep.subr.mxu0 0.0
    %2048 = vmatpush1.msra.mxu0 0.0
    %2049 = vmatprep.subr.mxu0 0.0
    %2050 = vmatpush1.msra.mxu0 0.0
    %2051 = vmatprep.subr.mxu0 0.0
    %2052 = vmatpush1.msra.mxu0 0.0
    %2053 = vmatprep.subr.mxu0 0.0
    %2054 = vmatpush1.msra.mxu0 0.0
    %2055 = vmatprep.subr.mxu0 0.0
    %2056 = vmatpush1.msra.mxu0 0.0
    %2057 = vmatprep.subr.mxu0 0.0
    %2058 = vmatpush1.msra.mxu0 0.0
    %2059 = vmatprep.subr.mxu0 0.0
    %2060 = vmatpush1.msra.mxu0 0.0
    %2061 = vmatprep.subr.mxu0 0.0
    %2062 = vmatpush1.msra.mxu0 0.0
    %2063 = vmatprep.subr.mxu0 0.0
    %2064 = vmatpush1.msra.mxu0 0.0
    %2065 = vmatprep.subr.mxu0 0.0
    %2066 = vmatpush1.msra.mxu0 0.0
    %2067 = vmatprep.subr.mxu0 0.0
    %2068 = vmatpush1.msra.mxu0 0.0
    %2069 = vmatprep.subr.mxu0 0.0
    %2070 = vmatpush1.msra.mxu0 0.0
    %2071 = vmatprep.subr.mxu0 0.0
    %2072 = vmatpush1.msra.mxu0 0.0
    %2073 = vmatprep.subr.mxu0 0.0
    %2074 = vmatpush1.msra.mxu0 0.0
    %2075 = vmatprep.subr.mxu0 0.0
    %2076 = vmatpush1.msra.mxu0 0.0
    %2077 = vmatprep.subr.mxu0 0.0
    %2078 = vmatpush1.msra.mxu0 0.0
    %2079 = vmatprep.subr.mxu0 0.0
    %2080 = vmatpush1.msra.mxu0 0.0
    %2081 = vmatprep.subr.mxu0 0.0
    %2082 = vmatpush1.msra.mxu0 0.0
    %2083 = vmatprep.subr.mxu0 0.0
    %2084 = vmatpush1.msra.mxu0 0.0
    %2085 = vmatprep.subr.mxu0 0.0
    %2086 = vmatpush1.msra.mxu0 0.0
    %2087 = vmatprep.subr.mxu0 0.0
    %2088 = vmatpush1.msra.mxu0 0.0
    %2089 = vmatprep.subr.mxu0 0.0
    %2090 = vmatpush1.msra.mxu0 0.0
    %2091 = vmatprep.mubr.f32.mxu0 0.0
    %v2092 = vand.u32 %v1616, 4294901760
    %2093 = vmatmul.mubr.f32.gmra.mrb[0].mxu0 %v2092
    %v2094 = vpop.f32.mrb[0].mxu0
    %v2095 = vadd.f32 %v1997, %v2094
    %v2096 = vpop.f32.mrb[0].mxu0
    %2097 = vmatprep.mubr.f32.mxu0 0.0
    %v2098 = vand.u32 %v1619, 4294901760
    %2099 = vmatmul.mubr.f32.gmra.mrb[0].mxu0 %v2098
    %v2100 = vpop.f32.mrb[0].mxu0
    %v2101 = vadd.f32 %v2005, %v2100
    %v2102 = vpop.f32.mrb[0].mxu0
    %2103 = vmatprep.mubr.f32.mxu0 0.0
    %v2104 = vand.u32 %v1622, 4294901760
    %2105 = vmatmul.mubr.f32.gmra.mrb[0].mxu0 %v2104
    %v2106 = vpop.f32.mrb[0].mxu0
    %v2107 = vadd.f32 %v2013, %v2106
    %v2108 = vpop.f32.mrb[0].mxu0
    %2109 = vmatprep.mubr.f32.mxu0 0.0
    %v2110 = vand.u32 %v1625, 4294901760
    %2111 = vmatmul.mubr.f32.gmra.mrb[0].mxu0 %v2110
    %v2112 = vpop.f32.mrb[0].mxu0
    %v2113 = vadd.f32 %v2021, %v2112
    %v2114 = vpop.f32.mrb[0].mxu0
    %2115 = vdwg.mxu0
    %2116 = vmatprep.subr.mxu0 0.0
    %v2117 = vand.u32 %v1629, 4294901760
    %2118 = vmatpush1.msra.mxu0 %v2117
    %2119 = vmatprep.subr.mxu0 0.0
    %2120 = vmatpush1.msra.mxu0 0.0
    %2121 = vmatprep.subr.mxu0 0.0
    %2122 = vmatpush1.msra.mxu0 0.0
    %2123 = vmatprep.subr.mxu0 0.0
    %2124 = vmatpush1.msra.mxu0 0.0
    %2125 = vmatprep.subr.mxu0 0.0
    %2126 = vmatpush1.msra.mxu0 0.0
    %2127 = vmatprep.subr.mxu0 0.0
    %2128 = vmatpush1.msra.mxu0 0.0
    %2129 = vmatprep.subr.mxu0 0.0
    %2130 = vmatpush1.msra.mxu0 0.0
    %2131 = vmatprep.subr.mxu0 0.0
    %2132 = vmatpush1.msra.mxu0 0.0
    %2133 = vmatprep.subr.mxu0 0.0
    %2134 = vmatpush1.msra.mxu0 0.0
    %2135 = vmatprep.subr.mxu0 0.0
    %2136 = vmatpush1.msra.mxu0 0.0
    %2137 = vmatprep.subr.mxu0 0.0
    %2138 = vmatpush1.msra.mxu0 0.0
    %2139 = vmatprep.subr.mxu0 0.0
    %2140 = vmatpush1.msra.mxu0 0.0
    %2141 = vmatprep.subr.mxu0 0.0
    %2142 = vmatpush1.msra.mxu0 0.0
    %2143 = vmatprep.subr.mxu0 0.0
    %2144 = vmatpush1.msra.mxu0 0.0
    %2145 = vmatprep.subr.mxu0 0.0
    %2146 = vmatpush1.msra.mxu0 0.0
    %2147 = vmatprep.subr.mxu0 0.0
    %2148 = vmatpush1.msra.mxu0 0.0
    %2149 = vmatprep.subr.mxu0 0.0
    %2150 = vmatpush1.msra.mxu0 0.0
    %2151 = vmatprep.subr.mxu0 0.0
    %2152 = vmatpush1.msra.mxu0 0.0
    %2153 = vmatprep.subr.mxu0 0.0
    %2154 = vmatpush1.msra.mxu0 0.0
    %2155 = vmatprep.subr.mxu0 0.0
    %2156 = vmatpush1.msra.mxu0 0.0
    %2157 = vmatprep.subr.mxu0 0.0
    %2158 = vmatpush1.msra.mxu0 0.0
    %2159 = vmatprep.subr.mxu0 0.0
    %2160 = vmatpush1.msra.mxu0 0.0
    %2161 = vmatprep.subr.mxu0 0.0
    %2162 = vmatpush1.msra.mxu0 0.0
    %2163 = vmatprep.subr.mxu0 0.0
    %2164 = vmatpush1.msra.mxu0 0.0
    %2165 = vmatprep.subr.mxu0 0.0
    %2166 = vmatpush1.msra.mxu0 0.0
    %2167 = vmatprep.subr.mxu0 0.0
    %2168 = vmatpush1.msra.mxu0 0.0
    %2169 = vmatprep.subr.mxu0 0.0
    %2170 = vmatpush1.msra.mxu0 0.0
    %2171 = vmatprep.subr.mxu0 0.0
    %2172 = vmatpush1.msra.mxu0 0.0
    %2173 = vmatprep.subr.mxu0 0.0
    %2174 = vmatpush1.msra.mxu0 0.0
    %2175 = vmatprep.subr.mxu0 0.0
    %2176 = vmatpush1.msra.mxu0 0.0
    %2177 = vmatprep.subr.mxu0 0.0
    %2178 = vmatpush1.msra.mxu0 0.0
    %2179 = vmatprep.subr.mxu0 0.0
    %2180 = vmatpush1.msra.mxu0 0.0
    %2181 = vmatprep.mubr.f32.mxu0 0.0
    %v2182 = vand.u32 %v1616, 4294901760
    %2183 = vmatmul.mubr.f32.gmra.mrb[0].mxu0 %v2182
    %v2184 = vpop.f32.mrb[0].mxu0
    %v2185 = vadd.f32 %v2095, %v2184
    %v2186 = vpop.f32.mrb[0].mxu0
    %2187 = vmatprep.mubr.f32.mxu0 0.0
    %v2188 = vand.u32 %v1619, 4294901760
    %2189 = vmatmul.mubr.f32.gmra.mrb[0].mxu0 %v2188
    %v2190 = vpop.f32.mrb[0].mxu0
    %v2191 = vadd.f32 %v2101, %v2190
    %v2192 = vpop.f32.mrb[0].mxu0
    %2193 = vmatprep.mubr.f32.mxu0 0.0
    %v2194 = vand.u32 %v1622, 4294901760
    %2195 = vmatmul.mubr.f32.gmra.mrb[0].mxu0 %v2194
    %v2196 = vpop.f32.mrb[0].mxu0
    %v2197 = vadd.f32 %v2107, %v2196
    %v2198 = vpop.f32.mrb[0].mxu0
    %2199 = vmatprep.mubr.f32.mxu0 0.0
    %v2200 = vand.u32 %v1625, 4294901760
    %2201 = vmatmul.mubr.f32.gmra.mrb[0].mxu0 %v2200
    %v2202 = vpop.f32.mrb[0].mxu0
    %v2203 = vadd.f32 %v2113, %v2202
    %v2204 = vpop.f32.mrb[0].mxu0
    %2205 = vdwg.mxu0
    %v2206 = vmul.f32 %v1586, %v1610
    %v2207 = vmul.f32 %v1587, %v1611
    %v2208 = vmul.f32 %v1588, %v1612
    %v2209 = vmul.f32 %v1589, %v1613
    %v2211 = vsel %vm1614, %v2206, 0
    %v2214 = vsel %vm1614, %v2207, 0
    %v2217 = vsel %vm1614, %v2208, 0
    %v2220 = vsel %vm1614, %v2209, 0
    %2222 = vmatprep.subr.mxu0 0.0
    %v2223 = vand.u32 %v1629, 4294901760
    %2224 = vmatpush1.msra.mxu0 %v2223
    %2225 = vmatprep.subr.mxu0 0.0
    %2226 = vmatpush1.msra.mxu0 0.0
    %2227 = vmatprep.subr.mxu0 0.0
    %2228 = vmatpush1.msra.mxu0 0.0
    %2229 = vmatprep.subr.mxu0 0.0
    %2230 = vmatpush1.msra.mxu0 0.0
    %2231 = vmatprep.subr.mxu0 0.0
    %2232 = vmatpush1.msra.mxu0 0.0
    %2233 = vmatprep.subr.mxu0 0.0
    %2234 = vmatpush1.msra.mxu0 0.0
    %2235 = vmatprep.subr.mxu0 0.0
    %2236 = vmatpush1.msra.mxu0 0.0
    %2237 = vmatprep.subr.mxu0 0.0
    %2238 = vmatpush1.msra.mxu0 0.0
    %2239 = vmatprep.subr.mxu0 0.0
    %2240 = vmatpush1.msra.mxu0 0.0
    %2241 = vmatprep.subr.mxu0 0.0
    %2242 = vmatpush1.msra.mxu0 0.0
    %2243 = vmatprep.subr.mxu0 0.0
    %2244 = vmatpush1.msra.mxu0 0.0
    %2245 = vmatprep.subr.mxu0 0.0
    %2246 = vmatpush1.msra.mxu0 0.0
    %2247 = vmatprep.subr.mxu0 0.0
    %2248 = vmatpush1.msra.mxu0 0.0
    %2249 = vmatprep.subr.mxu0 0.0
    %2250 = vmatpush1.msra.mxu0 0.0
    %2251 = vmatprep.subr.mxu0 0.0
    %2252 = vmatpush1.msra.mxu0 0.0
    %2253 = vmatprep.subr.mxu0 0.0
    %2254 = vmatpush1.msra.mxu0 0.0
    %2255 = vmatprep.subr.mxu0 0.0
    %2256 = vmatpush1.msra.mxu0 0.0
    %2257 = vmatprep.subr.mxu0 0.0
    %2258 = vmatpush1.msra.mxu0 0.0
    %2259 = vmatprep.subr.mxu0 0.0
    %2260 = vmatpush1.msra.mxu0 0.0
    %2261 = vmatprep.subr.mxu0 0.0
    %2262 = vmatpush1.msra.mxu0 0.0
    %2263 = vmatprep.subr.mxu0 0.0
    %2264 = vmatpush1.msra.mxu0 0.0
    %2265 = vmatprep.subr.mxu0 0.0
    %2266 = vmatpush1.msra.mxu0 0.0
    %2267 = vmatprep.subr.mxu0 0.0
    %2268 = vmatpush1.msra.mxu0 0.0
    %2269 = vmatprep.subr.mxu0 0.0
    %2270 = vmatpush1.msra.mxu0 0.0
    %2271 = vmatprep.subr.mxu0 0.0
    %2272 = vmatpush1.msra.mxu0 0.0
    %2273 = vmatprep.subr.mxu0 0.0
    %2274 = vmatpush1.msra.mxu0 0.0
    %2275 = vmatprep.subr.mxu0 0.0
    %2276 = vmatpush1.msra.mxu0 0.0
    %2277 = vmatprep.subr.mxu0 0.0
    %2278 = vmatpush1.msra.mxu0 0.0
    %2279 = vmatprep.subr.mxu0 0.0
    %2280 = vmatpush1.msra.mxu0 0.0
    %2281 = vmatprep.subr.mxu0 0.0
    %2282 = vmatpush1.msra.mxu0 0.0
    %2283 = vmatprep.subr.mxu0 0.0
    %2284 = vmatpush1.msra.mxu0 0.0
    %2285 = vmatprep.subr.mxu0 0.0
    %2286 = vmatpush1.msra.mxu0 0.0
    %2287 = vmatprep.mubr.f32.mxu0 0.0
    %v2288 = vand.u32 %v2211, 4294901760
    %v2289 = vsub.f32 %v2211, %v2288
    %v2290 = vand.u32 %v2289, 4294901760
    %v2291 = vsub.f32 %v2289, %v2290
    %v2292 = vand.u32 %v2291, 4294901760
    %2293 = vmatmul.mubr.f32.gmra.mrb[0].mxu0 %v2292
    %v2294 = vpop.f32.mrb[0].mxu0
    %v2295 = vadd.f32 0.0, %v2294
    %v2296 = vpop.f32.mrb[0].mxu0
    %2297 = vmatprep.mubr.f32.mxu0 0.0
    %v2298 = vand.u32 %v2214, 4294901760
    %v2299 = vsub.f32 %v2214, %v2298
    %v2300 = vand.u32 %v2299, 4294901760
    %v2301 = vsub.f32 %v2299, %v2300
    %v2302 = vand.u32 %v2301, 4294901760
    %2303 = vmatmul.mubr.f32.gmra.mrb[0].mxu0 %v2302
    %v2304 = vpop.f32.mrb[0].mxu0
    %v2305 = vadd.f32 0.0, %v2304
    %v2306 = vpop.f32.mrb[0].mxu0
    %2307 = vmatprep.mubr.f32.mxu0 0.0
    %v2308 = vand.u32 %v2217, 4294901760
    %v2309 = vsub.f32 %v2217, %v2308
    %v2310 = vand.u32 %v2309, 4294901760
    %v2311 = vsub.f32 %v2309, %v2310
    %v2312 = vand.u32 %v2311, 4294901760
    %2313 = vmatmul.mubr.f32.gmra.mrb[0].mxu0 %v2312
    %v2314 = vpop.f32.mrb[0].mxu0
    %v2315 = vadd.f32 0.0, %v2314
    %v2316 = vpop.f32.mrb[0].mxu0
    %2317 = vmatprep.mubr.f32.mxu0 0.0
    %v2318 = vand.u32 %v2220, 4294901760
    %v2319 = vsub.f32 %v2220, %v2318
    %v2320 = vand.u32 %v2319, 4294901760
    %v2321 = vsub.f32 %v2319, %v2320
    %v2322 = vand.u32 %v2321, 4294901760
    %2323 = vmatmul.mubr.f32.gmra.mrb[0].mxu0 %v2322
    %v2324 = vpop.f32.mrb[0].mxu0
    %v2325 = vadd.f32 0.0, %v2324
    %v2326 = vpop.f32.mrb[0].mxu0
    %2327 = vdwg.mxu0
    %2328 = vmatprep.subr.mxu0 0.0
    %v2329 = vand.u32 %v1629, 4294901760
    %v2330 = vsub.f32 %v1629, %v2329
    %v2331 = vand.u32 %v2330, 4294901760
    %v2332 = vsub.f32 %v2330, %v2331
    %v2333 = vand.u32 %v2332, 4294901760
    %2334 = vmatpush1.msra.mxu0 %v2333
    %2335 = vmatprep.subr.mxu0 0.0
    %2336 = vmatpush1.msra.mxu0 0.0
    %2337 = vmatprep.subr.mxu0 0.0
    %2338 = vmatpush1.msra.mxu0 0.0
    %2339 = vmatprep.subr.mxu0 0.0
    %2340 = vmatpush1.msra.mxu0 0.0
    %2341 = vmatprep.subr.mxu0 0.0
    %2342 = vmatpush1.msra.mxu0 0.0
    %2343 = vmatprep.subr.mxu0 0.0
    %2344 = vmatpush1.msra.mxu0 0.0
    %2345 = vmatprep.subr.mxu0 0.0
    %2346 = vmatpush1.msra.mxu0 0.0
    %2347 = vmatprep.subr.mxu0 0.0
    %2348 = vmatpush1.msra.mxu0 0.0
    %2349 = vmatprep.subr.mxu0 0.0
    %2350 = vmatpush1.msra.mxu0 0.0
    %2351 = vmatprep.subr.mxu0 0.0
    %2352 = vmatpush1.msra.mxu0 0.0
    %2353 = vmatprep.subr.mxu0 0.0
    %2354 = vmatpush1.msra.mxu0 0.0
    %2355 = vmatprep.subr.mxu0 0.0
    %2356 = vmatpush1.msra.mxu0 0.0
    %2357 = vmatprep.subr.mxu0 0.0
    %2358 = vmatpush1.msra.mxu0 0.0
    %2359 = vmatprep.subr.mxu0 0.0
    %2360 = vmatpush1.msra.mxu0 0.0
    %2361 = vmatprep.subr.mxu0 0.0
    %2362 = vmatpush1.msra.mxu0 0.0
    %2363 = vmatprep.subr.mxu0 0.0
    %2364 = vmatpush1.msra.mxu0 0.0
    %2365 = vmatprep.subr.mxu0 0.0
    %2366 = vmatpush1.msra.mxu0 0.0
    %2367 = vmatprep.subr.mxu0 0.0
    %2368 = vmatpush1.msra.mxu0 0.0
    %2369 = vmatprep.subr.mxu0 0.0
    %2370 = vmatpush1.msra.mxu0 0.0
    %2371 = vmatprep.subr.mxu0 0.0
    %2372 = vmatpush1.msra.mxu0 0.0
    %2373 = vmatprep.subr.mxu0 0.0
    %2374 = vmatpush1.msra.mxu0 0.0
    %2375 = vmatprep.subr.mxu0 0.0
    %2376 = vmatpush1.msra.mxu0 0.0
    %2377 = vmatprep.subr.mxu0 0.0
    %2378 = vmatpush1.msra.mxu0 0.0
    %2379 = vmatprep.subr.mxu0 0.0
    %2380 = vmatpush1.msra.mxu0 0.0
    %2381 = vmatprep.subr.mxu0 0.0
    %2382 = vmatpush1.msra.mxu0 0.0
    %2383 = vmatprep.subr.mxu0 0.0
    %2384 = vmatpush1.msra.mxu0 0.0
    %2385 = vmatprep.subr.mxu0 0.0
    %2386 = vmatpush1.msra.mxu0 0.0
    %2387 = vmatprep.subr.mxu0 0.0
    %2388 = vmatpush1.msra.mxu0 0.0
    %2389 = vmatprep.subr.mxu0 0.0
    %2390 = vmatpush1.msra.mxu0 0.0
    %2391 = vmatprep.subr.mxu0 0.0
    %2392 = vmatpush1.msra.mxu0 0.0
    %2393 = vmatprep.subr.mxu0 0.0
    %2394 = vmatpush1.msra.mxu0 0.0
    %2395 = vmatprep.subr.mxu0 0.0
    %2396 = vmatpush1.msra.mxu0 0.0
    %2397 = vmatprep.mubr.f32.mxu0 0.0
    %v2398 = vand.u32 %v2211, 4294901760
    %2399 = vmatmul.mubr.f32.gmra.mrb[0].mxu0 %v2398
    %v2400 = vpop.f32.mrb[0].mxu0
    %v2401 = vadd.f32 %v2295, %v2400
    %v2402 = vpop.f32.mrb[0].mxu0
    %2403 = vmatprep.mubr.f32.mxu0 0.0
    %v2404 = vand.u32 %v2214, 4294901760
    %2405 = vmatmul.mubr.f32.gmra.mrb[0].mxu0 %v2404
    %v2406 = vpop.f32.mrb[0].mxu0
    %v2407 = vadd.f32 %v2305, %v2406
    %v2408 = vpop.f32.mrb[0].mxu0
    %2409 = vmatprep.mubr.f32.mxu0 0.0
    %v2410 = vand.u32 %v2217, 4294901760
    %2411 = vmatmul.mubr.f32.gmra.mrb[0].mxu0 %v2410
    %v2412 = vpop.f32.mrb[0].mxu0
    %v2413 = vadd.f32 %v2315, %v2412
    %v2414 = vpop.f32.mrb[0].mxu0
    %2415 = vmatprep.mubr.f32.mxu0 0.0
    %v2416 = vand.u32 %v2220, 4294901760
    %2417 = vmatmul.mubr.f32.gmra.mrb[0].mxu0 %v2416
    %v2418 = vpop.f32.mrb[0].mxu0
    %v2419 = vadd.f32 %v2325, %v2418
    %v2420 = vpop.f32.mrb[0].mxu0
    %2421 = vdwg.mxu0
    %2422 = vmatprep.subr.mxu0 0.0
    %v2423 = vand.u32 %v1629, 4294901760
    %v2424 = vsub.f32 %v1629, %v2423
    %2425 = vmatpush1.msra.mxu0 %v2424
    %2426 = vmatprep.subr.mxu0 0.0
    %2427 = vmatpush1.msra.mxu0 0.0
    %2428 = vmatprep.subr.mxu0 0.0
    %2429 = vmatpush1.msra.mxu0 0.0
    %2430 = vmatprep.subr.mxu0 0.0
    %2431 = vmatpush1.msra.mxu0 0.0
    %2432 = vmatprep.subr.mxu0 0.0
    %2433 = vmatpush1.msra.mxu0 0.0
    %2434 = vmatprep.subr.mxu0 0.0
    %2435 = vmatpush1.msra.mxu0 0.0
    %2436 = vmatprep.subr.mxu0 0.0
    %2437 = vmatpush1.msra.mxu0 0.0
    %2438 = vmatprep.subr.mxu0 0.0
    %2439 = vmatpush1.msra.mxu0 0.0
    %2440 = vmatprep.subr.mxu0 0.0
    %2441 = vmatpush1.msra.mxu0 0.0
    %2442 = vmatprep.subr.mxu0 0.0
    %2443 = vmatpush1.msra.mxu0 0.0
    %2444 = vmatprep.subr.mxu0 0.0
    %2445 = vmatpush1.msra.mxu0 0.0
    %2446 = vmatprep.subr.mxu0 0.0
    %2447 = vmatpush1.msra.mxu0 0.0
    %2448 = vmatprep.subr.mxu0 0.0
    %2449 = vmatpush1.msra.mxu0 0.0
    %2450 = vmatprep.subr.mxu0 0.0
    %2451 = vmatpush1.msra.mxu0 0.0
    %2452 = vmatprep.subr.mxu0 0.0
    %2453 = vmatpush1.msra.mxu0 0.0
    %2454 = vmatprep.subr.mxu0 0.0
    %2455 = vmatpush1.msra.mxu0 0.0
    %2456 = vmatprep.subr.mxu0 0.0
    %2457 = vmatpush1.msra.mxu0 0.0
    %2458 = vmatprep.subr.mxu0 0.0
    %2459 = vmatpush1.msra.mxu0 0.0
    %2460 = vmatprep.subr.mxu0 0.0
    %2461 = vmatpush1.msra.mxu0 0.0
    %2462 = vmatprep.subr.mxu0 0.0
    %2463 = vmatpush1.msra.mxu0 0.0
    %2464 = vmatprep.subr.mxu0 0.0
    %2465 = vmatpush1.msra.mxu0 0.0
    %2466 = vmatprep.subr.mxu0 0.0
    %2467 = vmatpush1.msra.mxu0 0.0
    %2468 = vmatprep.subr.mxu0 0.0
    %2469 = vmatpush1.msra.mxu0 0.0
    %2470 = vmatprep.subr.mxu0 0.0
    %2471 = vmatpush1.msra.mxu0 0.0
    %2472 = vmatprep.subr.mxu0 0.0
    %2473 = vmatpush1.msra.mxu0 0.0
    %2474 = vmatprep.subr.mxu0 0.0
    %2475 = vmatpush1.msra.mxu0 0.0
    %2476 = vmatprep.subr.mxu0 0.0
    %2477 = vmatpush1.msra.mxu0 0.0
    %2478 = vmatprep.subr.mxu0 0.0
    %2479 = vmatpush1.msra.mxu0 0.0
    %2480 = vmatprep.subr.mxu0 0.0
    %2481 = vmatpush1.msra.mxu0 0.0
    %2482 = vmatprep.subr.mxu0 0.0
    %2483 = vmatpush1.msra.mxu0 0.0
    %2484 = vmatprep.subr.mxu0 0.0
    %2485 = vmatpush1.msra.mxu0 0.0
    %2486 = vmatprep.subr.mxu0 0.0
    %2487 = vmatpush1.msra.mxu0 0.0
    %2488 = vmatprep.mubr.f32.mxu0 0.0
    %v2489 = vand.u32 %v2211, 4294901760
    %v2490 = vsub.f32 %v2211, %v2489
    %2491 = vmatmul.mubr.f32.gmra.mrb[0].mxu0 %v2490
    %v2492 = vpop.f32.mrb[0].mxu0
    %v2493 = vadd.f32 %v2401, %v2492
    %v2494 = vpop.f32.mrb[0].mxu0
    %2495 = vmatprep.mubr.f32.mxu0 0.0
    %v2496 = vand.u32 %v2214, 4294901760
    %v2497 = vsub.f32 %v2214, %v2496
    %2498 = vmatmul.mubr.f32.gmra.mrb[0].mxu0 %v2497
    %v2499 = vpop.f32.mrb[0].mxu0
    %v2500 = vadd.f32 %v2407, %v2499
    %v2501 = vpop.f32.mrb[0].mxu0
    %2502 = vmatprep.mubr.f32.mxu0 0.0
    %v2503 = vand.u32 %v2217, 4294901760
    %v2504 = vsub.f32 %v2217, %v2503
    %2505 = vmatmul.mubr.f32.gmra.mrb[0].mxu0 %v2504
    %v2506 = vpop.f32.mrb[0].mxu0
    %v2507 = vadd.f32 %v2413, %v2506
    %v2508 = vpop.f32.mrb[0].mxu0
    %2509 = vmatprep.mubr.f32.mxu0 0.0
    %v2510 = vand.u32 %v2220, 4294901760
    %v2511 = vsub.f32 %v2220, %v2510
    %2512 = vmatmul.mubr.f32.gmra.mrb[0].mxu0 %v2511
    %v2513 = vpop.f32.mrb[0].mxu0
    %v2514 = vadd.f32 %v2419, %v2513
    %v2515 = vpop.f32.mrb[0].mxu0
    %2516 = vdwg.mxu0
    %2517 = vmatprep.subr.mxu0 0.0
    %v2518 = vand.u32 %v1629, 4294901760
    %2519 = vmatpush1.msra.mxu0 %v2518
    %2520 = vmatprep.subr.mxu0 0.0
    %2521 = vmatpush1.msra.mxu0 0.0
    %2522 = vmatprep.subr.mxu0 0.0
    %2523 = vmatpush1.msra.mxu0 0.0
    %2524 = vmatprep.subr.mxu0 0.0
    %2525 = vmatpush1.msra.mxu0 0.0
    %2526 = vmatprep.subr.mxu0 0.0
    %2527 = vmatpush1.msra.mxu0 0.0
    %2528 = vmatprep.subr.mxu0 0.0
    %2529 = vmatpush1.msra.mxu0 0.0
    %2530 = vmatprep.subr.mxu0 0.0
    %2531 = vmatpush1.msra.mxu0 0.0
    %2532 = vmatprep.subr.mxu0 0.0
    %2533 = vmatpush1.msra.mxu0 0.0
    %2534 = vmatprep.subr.mxu0 0.0
    %2535 = vmatpush1.msra.mxu0 0.0
    %2536 = vmatprep.subr.mxu0 0.0
    %2537 = vmatpush1.msra.mxu0 0.0
    %2538 = vmatprep.subr.mxu0 0.0
    %2539 = vmatpush1.msra.mxu0 0.0
    %2540 = vmatprep.subr.mxu0 0.0
    %2541 = vmatpush1.msra.mxu0 0.0
    %2542 = vmatprep.subr.mxu0 0.0
    %2543 = vmatpush1.msra.mxu0 0.0
    %2544 = vmatprep.subr.mxu0 0.0
    %2545 = vmatpush1.msra.mxu0 0.0
    %2546 = vmatprep.subr.mxu0 0.0
    %2547 = vmatpush1.msra.mxu0 0.0
    %2548 = vmatprep.subr.mxu0 0.0
    %2549 = vmatpush1.msra.mxu0 0.0
    %2550 = vmatprep.subr.mxu0 0.0
    %2551 = vmatpush1.msra.mxu0 0.0
    %2552 = vmatprep.subr.mxu0 0.0
    %2553 = vmatpush1.msra.mxu0 0.0
    %2554 = vmatprep.subr.mxu0 0.0
    %2555 = vmatpush1.msra.mxu0 0.0
    %2556 = vmatprep.subr.mxu0 0.0
    %2557 = vmatpush1.msra.mxu0 0.0
    %2558 = vmatprep.subr.mxu0 0.0
    %2559 = vmatpush1.msra.mxu0 0.0
    %2560 = vmatprep.subr.mxu0 0.0
    %2561 = vmatpush1.msra.mxu0 0.0
    %2562 = vmatprep.subr.mxu0 0.0
    %2563 = vmatpush1.msra.mxu0 0.0
    %2564 = vmatprep.subr.mxu0 0.0
    %2565 = vmatpush1.msra.mxu0 0.0
    %2566 = vmatprep.subr.mxu0 0.0
    %2567 = vmatpush1.msra.mxu0 0.0
    %2568 = vmatprep.subr.mxu0 0.0
    %2569 = vmatpush1.msra.mxu0 0.0
    %2570 = vmatprep.subr.mxu0 0.0
    %2571 = vmatpush1.msra.mxu0 0.0
    %2572 = vmatprep.subr.mxu0 0.0
    %2573 = vmatpush1.msra.mxu0 0.0
    %2574 = vmatprep.subr.mxu0 0.0
    %2575 = vmatpush1.msra.mxu0 0.0
    %2576 = vmatprep.subr.mxu0 0.0
    %2577 = vmatpush1.msra.mxu0 0.0
    %2578 = vmatprep.subr.mxu0 0.0
    %2579 = vmatpush1.msra.mxu0 0.0
    %2580 = vmatprep.subr.mxu0 0.0
    %2581 = vmatpush1.msra.mxu0 0.0
    %2582 = vmatprep.mubr.f32.mxu0 0.0
    %v2583 = vand.u32 %v2211, 4294901760
    %v2584 = vsub.f32 %v2211, %v2583
    %v2585 = vand.u32 %v2584, 4294901760
    %2586 = vmatmul.mubr.f32.gmra.mrb[0].mxu0 %v2585
    %v2587 = vpop.f32.mrb[0].mxu0
    %v2588 = vadd.f32 %v2493, %v2587
    %v2589 = vpop.f32.mrb[0].mxu0
    %2590 = vmatprep.mubr.f32.mxu0 0.0
    %v2591 = vand.u32 %v2214, 4294901760
    %v2592 = vsub.f32 %v2214, %v2591
    %v2593 = vand.u32 %v2592, 4294901760
    %2594 = vmatmul.mubr.f32.gmra.mrb[0].mxu0 %v2593
    %v2595 = vpop.f32.mrb[0].mxu0
    %v2596 = vadd.f32 %v2500, %v2595
    %v2597 = vpop.f32.mrb[0].mxu0
    %2598 = vmatprep.mubr.f32.mxu0 0.0
    %v2599 = vand.u32 %v2217, 4294901760
    %v2600 = vsub.f32 %v2217, %v2599
    %v2601 = vand.u32 %v2600, 4294901760
    %2602 = vmatmul.mubr.f32.gmra.mrb[0].mxu0 %v2601
    %v2603 = vpop.f32.mrb[0].mxu0
    %v2604 = vadd.f32 %v2507, %v2603
    %v2605 = vpop.f32.mrb[0].mxu0
    %2606 = vmatprep.mubr.f32.mxu0 0.0
    %v2607 = vand.u32 %v2220, 4294901760
    %v2608 = vsub.f32 %v2220, %v2607
    %v2609 = vand.u32 %v2608, 4294901760
    %2610 = vmatmul.mubr.f32.gmra.mrb[0].mxu0 %v2609
    %v2611 = vpop.f32.mrb[0].mxu0
    %v2612 = vadd.f32 %v2514, %v2611
    %v2613 = vpop.f32.mrb[0].mxu0
    %2614 = vdwg.mxu0
    %2615 = vmatprep.subr.mxu0 0.0
    %v2616 = vand.u32 %v1629, 4294901760
    %v2617 = vsub.f32 %v1629, %v2616
    %v2618 = vand.u32 %v2617, 4294901760
    %2619 = vmatpush1.msra.mxu0 %v2618
    %2620 = vmatprep.subr.mxu0 0.0
    %2621 = vmatpush1.msra.mxu0 0.0
    %2622 = vmatprep.subr.mxu0 0.0
    %2623 = vmatpush1.msra.mxu0 0.0
    %2624 = vmatprep.subr.mxu0 0.0
    %2625 = vmatpush1.msra.mxu0 0.0
    %2626 = vmatprep.subr.mxu0 0.0
    %2627 = vmatpush1.msra.mxu0 0.0
    %2628 = vmatprep.subr.mxu0 0.0
    %2629 = vmatpush1.msra.mxu0 0.0
    %2630 = vmatprep.subr.mxu0 0.0
    %2631 = vmatpush1.msra.mxu0 0.0
    %2632 = vmatprep.subr.mxu0 0.0
    %2633 = vmatpush1.msra.mxu0 0.0
    %2634 = vmatprep.subr.mxu0 0.0
    %2635 = vmatpush1.msra.mxu0 0.0
    %2636 = vmatprep.subr.mxu0 0.0
    %2637 = vmatpush1.msra.mxu0 0.0
    %2638 = vmatprep.subr.mxu0 0.0
    %2639 = vmatpush1.msra.mxu0 0.0
    %2640 = vmatprep.subr.mxu0 0.0
    %2641 = vmatpush1.msra.mxu0 0.0
    %2642 = vmatprep.subr.mxu0 0.0
    %2643 = vmatpush1.msra.mxu0 0.0
    %2644 = vmatprep.subr.mxu0 0.0
    %2645 = vmatpush1.msra.mxu0 0.0
    %2646 = vmatprep.subr.mxu0 0.0
    %2647 = vmatpush1.msra.mxu0 0.0
    %2648 = vmatprep.subr.mxu0 0.0
    %2649 = vmatpush1.msra.mxu0 0.0
    %2650 = vmatprep.subr.mxu0 0.0
    %2651 = vmatpush1.msra.mxu0 0.0
    %2652 = vmatprep.subr.mxu0 0.0
    %2653 = vmatpush1.msra.mxu0 0.0
    %2654 = vmatprep.subr.mxu0 0.0
    %2655 = vmatpush1.msra.mxu0 0.0
    %2656 = vmatprep.subr.mxu0 0.0
    %2657 = vmatpush1.msra.mxu0 0.0
    %2658 = vmatprep.subr.mxu0 0.0
    %2659 = vmatpush1.msra.mxu0 0.0
    %2660 = vmatprep.subr.mxu0 0.0
    %2661 = vmatpush1.msra.mxu0 0.0
    %2662 = vmatprep.subr.mxu0 0.0
    %2663 = vmatpush1.msra.mxu0 0.0
    %2664 = vmatprep.subr.mxu0 0.0
    %2665 = vmatpush1.msra.mxu0 0.0
    %2666 = vmatprep.subr.mxu0 0.0
    %2667 = vmatpush1.msra.mxu0 0.0
    %2668 = vmatprep.subr.mxu0 0.0
    %2669 = vmatpush1.msra.mxu0 0.0
    %2670 = vmatprep.subr.mxu0 0.0
    %2671 = vmatpush1.msra.mxu0 0.0
    %2672 = vmatprep.subr.mxu0 0.0
    %2673 = vmatpush1.msra.mxu0 0.0
    %2674 = vmatprep.subr.mxu0 0.0
    %2675 = vmatpush1.msra.mxu0 0.0
    %2676 = vmatprep.subr.mxu0 0.0
    %2677 = vmatpush1.msra.mxu0 0.0
    %2678 = vmatprep.subr.mxu0 0.0
    %2679 = vmatpush1.msra.mxu0 0.0
    %2680 = vmatprep.subr.mxu0 0.0
    %2681 = vmatpush1.msra.mxu0 0.0
    %2682 = vmatprep.mubr.f32.mxu0 0.0
    %v2683 = vand.u32 %v2211, 4294901760
    %2684 = vmatmul.mubr.f32.gmra.mrb[0].mxu0 %v2683
    %v2685 = vpop.f32.mrb[0].mxu0
    %v2686 = vadd.f32 %v2588, %v2685
    %v2687 = vpop.f32.mrb[0].mxu0
    %2688 = vmatprep.mubr.f32.mxu0 0.0
    %v2689 = vand.u32 %v2214, 4294901760
    %2690 = vmatmul.mubr.f32.gmra.mrb[0].mxu0 %v2689
    %v2691 = vpop.f32.mrb[0].mxu0
    %v2692 = vadd.f32 %v2596, %v2691
    %v2693 = vpop.f32.mrb[0].mxu0
    %2694 = vmatprep.mubr.f32.mxu0 0.0
    %v2695 = vand.u32 %v2217, 4294901760
    %2696 = vmatmul.mubr.f32.gmra.mrb[0].mxu0 %v2695
    %v2697 = vpop.f32.mrb[0].mxu0
    %v2698 = vadd.f32 %v2604, %v2697
    %v2699 = vpop.f32.mrb[0].mxu0
    %2700 = vmatprep.mubr.f32.mxu0 0.0
    %v2701 = vand.u32 %v2220, 4294901760
    %2702 = vmatmul.mubr.f32.gmra.mrb[0].mxu0 %v2701
    %v2703 = vpop.f32.mrb[0].mxu0
    %v2704 = vadd.f32 %v2612, %v2703
    %v2705 = vpop.f32.mrb[0].mxu0
    %2706 = vdwg.mxu0
    %2707 = vmatprep.subr.mxu0 0.0
    %v2708 = vand.u32 %v1629, 4294901760
    %2709 = vmatpush1.msra.mxu0 %v2708
    %2710 = vmatprep.subr.mxu0 0.0
    %2711 = vmatpush1.msra.mxu0 0.0
    %2712 = vmatprep.subr.mxu0 0.0
    %2713 = vmatpush1.msra.mxu0 0.0
    %2714 = vmatprep.subr.mxu0 0.0
    %2715 = vmatpush1.msra.mxu0 0.0
    %2716 = vmatprep.subr.mxu0 0.0
    %2717 = vmatpush1.msra.mxu0 0.0
    %2718 = vmatprep.subr.mxu0 0.0
    %2719 = vmatpush1.msra.mxu0 0.0
    %2720 = vmatprep.subr.mxu0 0.0
    %2721 = vmatpush1.msra.mxu0 0.0
    %2722 = vmatprep.subr.mxu0 0.0
    %2723 = vmatpush1.msra.mxu0 0.0
    %2724 = vmatprep.subr.mxu0 0.0
    %2725 = vmatpush1.msra.mxu0 0.0
    %2726 = vmatprep.subr.mxu0 0.0
    %2727 = vmatpush1.msra.mxu0 0.0
    %2728 = vmatprep.subr.mxu0 0.0
    %2729 = vmatpush1.msra.mxu0 0.0
    %2730 = vmatprep.subr.mxu0 0.0
    %2731 = vmatpush1.msra.mxu0 0.0
    %2732 = vmatprep.subr.mxu0 0.0
    %2733 = vmatpush1.msra.mxu0 0.0
    %2734 = vmatprep.subr.mxu0 0.0
    %2735 = vmatpush1.msra.mxu0 0.0
    %2736 = vmatprep.subr.mxu0 0.0
    %2737 = vmatpush1.msra.mxu0 0.0
    %2738 = vmatprep.subr.mxu0 0.0
    %2739 = vmatpush1.msra.mxu0 0.0
    %2740 = vmatprep.subr.mxu0 0.0
    %2741 = vmatpush1.msra.mxu0 0.0
    %2742 = vmatprep.subr.mxu0 0.0
    %2743 = vmatpush1.msra.mxu0 0.0
    %2744 = vmatprep.subr.mxu0 0.0
    %2745 = vmatpush1.msra.mxu0 0.0
    %2746 = vmatprep.subr.mxu0 0.0
    %2747 = vmatpush1.msra.mxu0 0.0
    %2748 = vmatprep.subr.mxu0 0.0
    %2749 = vmatpush1.msra.mxu0 0.0
    %2750 = vmatprep.subr.mxu0 0.0
    %2751 = vmatpush1.msra.mxu0 0.0
    %2752 = vmatprep.subr.mxu0 0.0
    %2753 = vmatpush1.msra.mxu0 0.0
    %2754 = vmatprep.subr.mxu0 0.0
    %2755 = vmatpush1.msra.mxu0 0.0
    %2756 = vmatprep.subr.mxu0 0.0
    %2757 = vmatpush1.msra.mxu0 0.0
    %2758 = vmatprep.subr.mxu0 0.0
    %2759 = vmatpush1.msra.mxu0 0.0
    %2760 = vmatprep.subr.mxu0 0.0
    %2761 = vmatpush1.msra.mxu0 0.0
    %2762 = vmatprep.subr.mxu0 0.0
    %2763 = vmatpush1.msra.mxu0 0.0
    %2764 = vmatprep.subr.mxu0 0.0
    %2765 = vmatpush1.msra.mxu0 0.0
    %2766 = vmatprep.subr.mxu0 0.0
    %2767 = vmatpush1.msra.mxu0 0.0
    %2768 = vmatprep.subr.mxu0 0.0
    %2769 = vmatpush1.msra.mxu0 0.0
    %2770 = vmatprep.subr.mxu0 0.0
    %2771 = vmatpush1.msra.mxu0 0.0
    %2772 = vmatprep.mubr.f32.mxu0 0.0
    %v2773 = vand.u32 %v2211, 4294901760
    %2774 = vmatmul.mubr.f32.gmra.mrb[0].mxu0 %v2773
    %v2775 = vpop.f32.mrb[0].mxu0
    %v2776 = vadd.f32 %v2686, %v2775
    %v2777 = vpop.f32.mrb[0].mxu0
    %2778 = vmatprep.mubr.f32.mxu0 0.0
    %v2779 = vand.u32 %v2214, 4294901760
    %2780 = vmatmul.mubr.f32.gmra.mrb[0].mxu0 %v2779
    %v2781 = vpop.f32.mrb[0].mxu0
    %v2782 = vadd.f32 %v2692, %v2781
    %v2783 = vpop.f32.mrb[0].mxu0
    %2784 = vmatprep.mubr.f32.mxu0 0.0
    %v2785 = vand.u32 %v2217, 4294901760
    %2786 = vmatmul.mubr.f32.gmra.mrb[0].mxu0 %v2785
    %v2787 = vpop.f32.mrb[0].mxu0
    %v2788 = vadd.f32 %v2698, %v2787
    %v2789 = vpop.f32.mrb[0].mxu0
    %2790 = vmatprep.mubr.f32.mxu0 0.0
    %v2791 = vand.u32 %v2220, 4294901760
    %2792 = vmatmul.mubr.f32.gmra.mrb[0].mxu0 %v2791
    %v2793 = vpop.f32.mrb[0].mxu0
    %v2794 = vadd.f32 %v2704, %v2793
    %v2795 = vpop.f32.mrb[0].mxu0
    %2796 = vdwg.mxu0
    %v2797 = vld [vmem:[%s1] sm:$0x1]
    %v2798 = vld [vmem:[%s2] sm:$0x1]
    %v2799 = vmul.f32 %v21, %v2185
    %v2800 = vmul.f32 %v22, %v2191
    %v2801 = vmul.f32 %v23, %v2197
    %v2802 = vmul.f32 %v24, %v2203
    %v2803 = vsub.f32 %v2799, %v2776
    %v2804 = vsub.f32 %v2800, %v2782
    %v2805 = vsub.f32 %v2801, %v2788
    %v2806 = vsub.f32 %v2802, %v2794
    %v2808 = vlaneseq
    %v2809 = vshrl.u32 %v2808, 7
    %v2810 = vsub.s32 0, %v2809
    %v2811 = vrot.slane %v2797, %v2810
    %v2813 = vmul.f32 %v2803, %v2811
    %v2814 = vmul.f32 %v2804, %v2811
    %v2815 = vmul.f32 %v2805, %v2811
    %v2816 = vmul.f32 %v2806, %v2811
    %v2818 = vlaneseq
    %v2819 = vshrl.u32 %v2818, 7
    %v2820 = vsub.s32 0, %v2819
    %v2821 = vrot.slane %v2798, %v2820
    %v2823 = vadd.f32 %v2813, %v2821
    %v2824 = vadd.f32 %v2814, %v2821
    %v2825 = vadd.f32 %v2815, %v2821
    %v2826 = vadd.f32 %v2816, %v2821
    %2827 = vst [vmem:[#allocation2] sm:$0xff] %v2823
    %2828 = vst [vmem:[#allocation2 + $0x8] sm:$0xff] %v2824
    %2829 = vst [vmem:[#allocation2 + $0x10] sm:$0xff] %v2825
    %2830 = vst [vmem:[#allocation2 + $0x18] sm:$0x1] %v2826
    // Predicated region
    $region22: #{tpu_custom_call.1} parent=1 // pred_check
      _
    $region23: #{tpu_custom_call.1} parent=1 // pred_check_branch
      %2832 = sbr.rel (0) target = $region25
    $region24: #{tpu_custom_call.1} parent=1 // pred_region
      %s2834 = ssub.s32 512, 512
      %2835 = vsyncadd [#allocation3], %s2834
      %s2836 = sshll.u32 [#allocation2], 4
      %s2837 = int_to_ptr.vmem [resolvable:$true] %s2836
      %2842 = dma.vmem_to_hbm [thread:$0]  %s2837, 512, %s5, [#allocation3], 128, 128, 8
    $region25: #{tpu_custom_call.1} parent=1 // pred_fallthru
      _
    // Predicated region
    $region26: #{tpu_custom_call.1} parent=1 // pred_check
      _
    $region27: #{tpu_custom_call.1} parent=1 // pred_check_branch
      %2844 = sbr.rel (0) target = $region29
    $region28: #{tpu_custom_call.1} parent=1 // pred_region
      %2845 = dma.done [#allocation3], 512
    $region29: #{tpu_custom_call.1} parent=1 // pred_fallthru
      _
    %2846 = vsyncpa [#allocation3], 1

</llo_original>
